<compile_context>
chip_gen: v7x
topology: tpu7x:2x2x1
jax: 0.10.0
libtpu: 0.0.40
codegen_flags: <defaults>
</compile_context>

<pallas_src>
import functools

import jax
import jax.numpy as jnp
from jax import lax
from jax.experimental import pallas as pl
from jax.experimental.pallas import tpu as pltpu


def _pick_t_chunk(T, cap=8):
    """Largest divisor of T that is <= cap and < T (so the grid has >= 2 chunks
    and the carried-state / pipelining path is exercised even at demo sizes)."""
    if T <= 1:
        return 1
    best = 1
    for d in range(1, min(T - 1, cap) + 1):
        if T % d == 0:
            best = d
    return best


def _make_bigru_layer_kernel(T, B, H, C):
    """One bidirectional GRU layer; time is chunked over the grid axis.

    Grid: (T // C,), sequential ("arbitrary"); the recurrent states are carried
    across chunks in VMEM scratch (zeroed at chunk 0).

    Refs per grid step i (chunk of C timesteps):
      len_ref  (B, 1)      i32 : per-row sequence lengths (sorted order).
      gi_f_ref (C, B, 3H) bf16 : x @ W_ih_f^T + b_ih_f (+ b_hh_f[r,z]) for
                                 forward times [i*C, (i+1)*C).
      gi_b_ref (C, B, 3H) bf16 : same for the backward direction, but the
                                 index_map already selects the time-reversed
                                 chunk; in-chunk index C-1-s gives original
                                 time T-1-(i*C+s).
      whh_ref  (2, H, 3H) bf16 : [W_hh_fwd^T ; W_hh_bwd^T].
      bhn_ref  (2, H)      f32 : n-gate recurrent bias per direction.
    Outputs:
      yf_ref (C, B, H) bf16 : forward per-step hidden, original time order.
      yb_ref (C, B, H) bf16 : backward per-step hidden, original time order
                              (output block is the time-reversed chunk).
      hn_ref (2, B, H)  f32 : final hidden [fwd; bwd] (valid after last chunk).
    Scratch:
      hf_scr, hb_scr (B, H) f32 : carried recurrent state per direction.
    """

    def kernel(len_ref, gi_f_ref, gi_b_ref, whh_ref, bhn_ref,
               yf_ref, yb_ref, hn_ref, hf_scr, hb_scr):
        i = pl.program_id(0)

        @pl.when(i == 0)
        def _():
            hf_scr[...] = jnp.zeros_like(hf_scr)
            hb_scr[...] = jnp.zeros_like(hb_scr)

        # Loop-invariant loads hoisted out of the recurrence.
        whh = whh_ref[...]                       # (2, H, 3H) bf16
        whh_f, whh_b = whh[0], whh[1]
        bhn = bhn_ref[...]                       # (2, H) f32
        bhn_f, bhn_b = bhn[0:1, :], bhn[1:2, :]
        lens = len_ref[...]                      # (B, 1) int32
        t0 = i * C                               # global forward time offset

        def gru_cell(gi, h_prev, w_hh, b_hn):
            # gi: (B, 3H) f32 (b_ih + b_hh[r,z] already folded in),
            # h_prev: (B, H) f32 carried state.
            gh = jnp.dot(h_prev.astype(jnp.bfloat16), w_hh,
                         preferred_element_type=jnp.float32)       # (B, 3H)
            r = jax.nn.sigmoid(gi[:, 0 * H:1 * H] + gh[:, 0 * H:1 * H])
            z = jax.nn.sigmoid(gi[:, 1 * H:2 * H] + gh[:, 1 * H:2 * H])
            n = jnp.tanh(gi[:, 2 * H:3 * H] + r * (gh[:, 2 * H:3 * H] + b_hn))
            return (1.0 - z) * n + z * h_prev

        def step(s, carry):
            h_f, h_b = carry
            t = t0 + s                                             # fwd orig time

            # ---- forward direction ----
            gi_f = gi_f_ref[s].astype(jnp.float32)                 # (B, 3H)
            h_f_new = gru_cell(gi_f, h_f, whh_f, bhn_f)
            v_f = t < lens                                         # (B, 1) bool
            h_f = jnp.where(v_f, h_f_new, h_f)                     # freeze past len
            yf_ref[s] = jnp.where(v_f, h_f, 0.0).astype(yf_ref.dtype)

            # ---- backward direction (walks flipped time) ----
            sb = (C - 1) - s                                       # in-chunk bwd idx
            gi_b = gi_b_ref[sb].astype(jnp.float32)
            h_b_new = gru_cell(gi_b, h_b, whh_b, bhn_b)
            v_b = (T - 1 - t) < lens
            h_b = jnp.where(v_b, h_b_new, h_b)
            yb_ref[sb] = jnp.where(v_b, h_b, 0.0).astype(yb_ref.dtype)
            return h_f, h_b

        h_f, h_b = lax.fori_loop(0, C, step, (hf_scr[...], hb_scr[...]),
                                 unroll=True)    # C is small & static (<= 8)

        # Carry state to the next chunk; final hidden (last chunk's value wins).
        hf_scr[...] = h_f
        hb_scr[...] = h_b
        hn_ref[0] = h_f
        hn_ref[1] = h_b

    return kernel


def bigru_layer(x_parts, lengths_b1, p_fwd, p_bwd, hidden_dim, t_chunk):
    """One bidirectional GRU layer.

    x_parts: list of time-major (T, B, D_k) tensors whose feature concat is the
             layer input (passing the halves separately avoids materializing
             the (T, B, 2H) concat between layers).
    Returns y_f (T, B, H) bf16, y_b (T, B, H) bf16 (both original time order),
    and hn (2, B, H) f32.
    """
    T, B = x_parts[0].shape[:2]
    H = hidden_dim
    C = t_chunk
    assert T % C == 0
    nc = T // C

    # --- hoisted input-to-hidden projection (one big MXU matmul per part per
    # direction over all timesteps); r/z thirds of b_hh folded in here. ---
    def gi_dir(p):
        acc = None
        off = 0
        for xp in x_parts:
            d = xp.shape[-1]
            w = p['w_ih_t'][off:off + d].astype(jnp.bfloat16)       # (d, 3H)
            g = jnp.dot(xp.reshape(T * B, d).astype(jnp.bfloat16), w,
                        preferred_element_type=jnp.float32)
            acc = g if acc is None else acc + g
            off += d
        bias = p['b_ih'] + jnp.concatenate(
            [p['b_hh'][:, :2 * H], jnp.zeros((1, H), jnp.float32)], axis=-1)
        return (acc + bias).astype(jnp.bfloat16).reshape(T, B, 3 * H)

    gi_f = gi_dir(p_fwd)                                            # (T, B, 3H)
    gi_b = gi_dir(p_bwd)                                            # NOT flipped

    whh = jnp.stack([p_fwd['w_hh_t'], p_bwd['w_hh_t']],
                    axis=0).astype(jnp.bfloat16)                    # (2, H, 3H)
    bhn = jnp.concatenate([p_fwd['b_hh'][:, 2 * H:],
                           p_bwd['b_hh'][:, 2 * H:]], axis=0)       # (2, H)

    kernel = _make_bigru_layer_kernel(T, B, H, C)
    y_f, y_b, hn = pl.pallas_call(
        kernel,
        out_shape=(jax.ShapeDtypeStruct((T, B, H), jnp.bfloat16),
                   jax.ShapeDtypeStruct((T, B, H), jnp.bfloat16),
                   jax.ShapeDtypeStruct((2, B, H), jnp.float32)),
        grid_spec=pltpu.PrefetchScalarGridSpec(
            num_scalar_prefetch=0,
            grid=(nc,),                       # time chunks, sequential
            in_specs=[
                pl.BlockSpec((B, 1), lambda i: (0, 0)),                   # lengths
                pl.BlockSpec((C, B, 3 * H), lambda i: (i, 0, 0)),         # gi fwd
                pl.BlockSpec((C, B, 3 * H), lambda i: (nc - 1 - i, 0, 0)),# gi bwd (time flip via index_map)
                pl.BlockSpec((2, H, 3 * H), lambda i: (0, 0, 0)),         # W_hh
                pl.BlockSpec((2, H), lambda i: (0, 0)),                   # b_hn
            ],
            out_specs=(
                pl.BlockSpec((C, B, H), lambda i: (i, 0, 0)),             # y fwd
                pl.BlockSpec((C, B, H), lambda i: (nc - 1 - i, 0, 0)),    # y bwd (un-flip via index_map)
                pl.BlockSpec((2, B, H), lambda i: (0, 0, 0)),             # h_n
            ),
            scratch_shapes=[pltpu.VMEM((B, H), jnp.float32),
                            pltpu.VMEM((B, H), jnp.float32)],
        ),
        compiler_params=pltpu.CompilerParams(
            dimension_semantics=("arbitrary",),
            # Chunk sizing must respect the per-generation VMEM budget
            # (v7x: 64 MiB physical / 32 MiB default scoped).
            vmem_limit_bytes=32 * 1024 * 1024,
        ),
    )(lengths_b1, gi_f, gi_b, whh, bhn)

    # TODO(synk): on v7x, split the two directions onto the 2 TensorCores via a
    # leading "parallel" grid axis (they are independent recurrences).
    # TODO(synk): fuse the x @ W_ih^T projection into the kernel per chunk to
    # eliminate the gi HBM round-trip entirely.
    return y_f, y_b, hn


def bigru(emb_btd, lengths, params, num_layers, hidden_dim, t_chunk):
    """Bidirectional multi-layer GRU over right-padded sequences."""
    B, T, _ = emb_btd.shape
    lengths_b1 = lengths.reshape(B, 1).astype(jnp.int32)
    x_parts = [jnp.transpose(emb_btd, (1, 0, 2)).astype(jnp.float32)]  # (T, B, D)

    hiddens = []
    y_f = y_b = None
    for layer in range(num_layers):
        p_fwd, p_bwd = params['gru'][layer]
        y_f, y_b, hn = bigru_layer(x_parts, lengths_b1, p_fwd, p_bwd,
                                   hidden_dim, t_chunk)
        hiddens.append(hn[0])        # forward final hidden of this layer
        hiddens.append(hn[1])        # backward final hidden of this layer
        x_parts = [y_f, y_b]         # next layer reads the halves (no concat)
        # TODO(synk): nn.GRU inter-layer dropout is train-mode only; eval => identity.

    # seq_out = (fwd_half + bwd_half) / 2, computed directly from the halves.
    seq_out_tbh = (y_f.astype(jnp.float32) + y_b.astype(jnp.float32)) * 0.5
    seq_out = jnp.transpose(seq_out_tbh, (1, 0, 2))                 # (B, T, H)
    h_n = jnp.stack(hiddens, axis=0)                                # (2L, B, H)
    return seq_out, h_n


def gru_encoder_forward(tokens, params, *, num_layers, hidden_dim):
    # mask / sort_by_length glue (matches the torch module; outputs stay in
    # sorted order, exactly like the module which never unsorts).
    mask = (tokens != 0).astype(jnp.float32)
    seq_length = mask.sum(axis=1)
    sorted_ind = jnp.argsort(-seq_length)
    sorted_x = tokens[sorted_ind]
    sorted_length = seq_length[sorted_ind].astype(jnp.int32)

    emb = params['embedding'][sorted_x]                             # (B, T, D)

    T = tokens.shape[1]
    t_chunk = _pick_t_chunk(T)
    # TODO(synk): pad_packed_sequence truncates to the batch max length; we keep
    # full T (demo inputs keep max length == T so shapes match torch exactly).
    seq_out, gru_hidden = bigru(emb, sorted_length, params,
                                num_layers, hidden_dim, t_chunk)
    return seq_out, gru_hidden


def init_params(key, vocab_size, emb_dim, hidden_dim, num_layers):
    """Deterministic synthetic parameters (same shapes as nn.Embedding + nn.GRU)."""
    k_emb, k_gru = jax.random.split(key)
    params = {'embedding': jax.random.normal(k_emb, (vocab_size, emb_dim), jnp.float32)}
    bound = float(1.0 / (hidden_dim ** 0.5))
    keys = jax.random.split(k_gru, num_layers * 2 * 4).reshape(num_layers, 2, 4, -1)
    gru = []
    for layer in range(num_layers):
        in_dim = emb_dim if layer == 0 else 2 * hidden_dim
        dirs = []
        for d in range(2):
            kw1, kw2, kb1, kb2 = keys[layer, d]
            w_ih = jax.random.uniform(kw1, (3 * hidden_dim, in_dim), jnp.float32, -bound, bound)
            w_hh = jax.random.uniform(kw2, (3 * hidden_dim, hidden_dim), jnp.float32, -bound, bound)
            b_ih = jax.random.uniform(kb1, (1, 3 * hidden_dim), jnp.float32, -bound, bound)
            b_hh = jax.random.uniform(kb2, (1, 3 * hidden_dim), jnp.float32, -bound, bound)
            dirs.append({'w_ih_t': w_ih.T, 'w_hh_t': w_hh.T, 'b_ih': b_ih, 'b_hh': b_hh})
        gru.append(dirs)
    params['gru'] = gru
    return params


if __name__ == "__main__":
    B, T = 4, 8
    vocab_size, emb_dim, hidden_dim, num_layers = 50, 16, 32, 2

    key = jax.random.PRNGKey(0)
    k_tok, k_par = jax.random.split(key)

    # Right-padded token ids; sequence 0 spans the full T so unpacked length == T.
    tokens = jax.random.randint(k_tok, (B, T), 1, vocab_size, dtype=jnp.int32)
    lengths = jnp.array([T, 3, 5, 2], dtype=jnp.int32)
    tokens = jnp.where(jnp.arange(T)[None, :] < lengths[:, None], tokens, 0)

    params = init_params(k_par, vocab_size, emb_dim, hidden_dim, num_layers)

    fwd = jax.jit(functools.partial(gru_encoder_forward,
                                    num_layers=num_layers, hidden_dim=hidden_dim))
    seq_out, gru_hidden = fwd(tokens, params)
    jax.block_until_ready((seq_out, gru_hidden))

    assert seq_out.shape == (B, T, hidden_dim)
    assert gru_hidden.shape == (num_layers * 2, B, hidden_dim)
    assert bool(jnp.all(jnp.isfinite(seq_out))) and bool(jnp.all(jnp.isfinite(gru_hidden)))
    print("KERNEL_OK")
</pallas_src>

<mosaic_0001>
module attributes {stable_mosaic.version = 11 : i64} {
  func.func @kernel(%arg0: i32, %arg1: memref<4x1xi32, #tpu.memory_space<vmem>>, %arg2: memref<4x4x96xbf16, #tpu.memory_space<vmem>>, %arg3: memref<4x4x96xbf16, #tpu.memory_space<vmem>>, %arg4: memref<2x32x96xbf16, #tpu.memory_space<vmem>>, %arg5: memref<2x32xf32, #tpu.memory_space<vmem>>, %arg6: memref<4x4x32xbf16, #tpu.memory_space<vmem>>, %arg7: memref<4x4x32xbf16, #tpu.memory_space<vmem>>, %arg8: memref<2x4x32xf32, #tpu.memory_space<vmem>>, %arg9: memref<4x32xf32, #tpu.memory_space<vmem>>, %arg10: memref<4x32xf32, #tpu.memory_space<vmem>>) attributes {dimension_semantics = [#tpu.dimension_semantics<arbitrary>], iteration_bounds = array<i64: 2>, scalar_prefetch = 0 : i64, scratch_operands = 2 : i64, tpu.core_type = #tpu.core_type<tc>, window_params = [{pipeline_mode = #tpu.pipeline_mode<synchronous>, transform_indices = @transform_0, window_bounds = array<i64: 4, 1>}, {transform_indices = @transform_1, window_bounds = array<i64: 4, 4, 96>}, {transform_indices = @transform_2, window_bounds = array<i64: 4, 4, 96>}, {pipeline_mode = #tpu.pipeline_mode<synchronous>, transform_indices = @transform_3, window_bounds = array<i64: 2, 32, 96>}, {pipeline_mode = #tpu.pipeline_mode<synchronous>, transform_indices = @transform_4, window_bounds = array<i64: 2, 32>}, {transform_indices = @transform_5, window_bounds = array<i64: 4, 4, 32>}, {transform_indices = @transform_6, window_bounds = array<i64: 4, 4, 32>}, {pipeline_mode = #tpu.pipeline_mode<synchronous>, transform_indices = @transform_7, window_bounds = array<i64: 2, 4, 32>}]} {
    %c0_i32 = arith.constant 0 : i32
    %0 = arith.cmpi eq, %arg0, %c0_i32 : i32
    %1 = arith.extui %0 : i1 to i32
    %c0_i32_0 = arith.constant 0 : i32
    %2 = arith.cmpi ne, %1, %c0_i32_0 : i32
    scf.if %2 {
      %cst_100 = arith.constant 0.000000e+00 : f32
      %419 = vector.broadcast %cst_100 : f32 to vector<4x32xf32>
      %c0_101 = arith.constant 0 : index
      %c0_102 = arith.constant 0 : index
      %420 = vector.load %arg9[%c0_101, %c0_102] : memref<4x32xf32, #tpu.memory_space<vmem>>, vector<4x32xf32>
      tpu.vector_store %arg9[%c0_101, %c0_102], %419 {strides = array<i32>} : memref<4x32xf32, #tpu.memory_space<vmem>>, vector<4x32xf32>,
      %cst_103 = arith.constant 0.000000e+00 : f32
      %421 = vector.broadcast %cst_103 : f32 to vector<4x32xf32>
      %c0_104 = arith.constant 0 : index
      %c0_105 = arith.constant 0 : index
      %422 = vector.load %arg10[%c0_104, %c0_105] : memref<4x32xf32, #tpu.memory_space<vmem>>, vector<4x32xf32>
      tpu.vector_store %arg10[%c0_104, %c0_105], %421 {strides = array<i32>} : memref<4x32xf32, #tpu.memory_space<vmem>>, vector<4x32xf32>,
    } else {
    }
    %c0 = arith.constant 0 : index
    %c0_1 = arith.constant 0 : index
    %c0_2 = arith.constant 0 : index
    %3 = vector.load %arg4[%c0, %c0_1, %c0_2] : memref<2x32x96xbf16, #tpu.memory_space<vmem>>, vector<2x32x96xbf16>
    %4 = vector.extract_strided_slice %3 {offsets = [0, 0, 0], sizes = [1, 32, 96], strides = [1, 1, 1]} : vector<2x32x96xbf16> to vector<1x32x96xbf16>
    %5 = vector.shape_cast %4 : vector<1x32x96xbf16> to vector<32x96xbf16>
    %6 = vector.extract_strided_slice %3 {offsets = [1, 0, 0], sizes = [1, 32, 96], strides = [1, 1, 1]} : vector<2x32x96xbf16> to vector<1x32x96xbf16>
    %7 = vector.shape_cast %6 : vector<1x32x96xbf16> to vector<32x96xbf16>
    %c0_3 = arith.constant 0 : index
    %c0_4 = arith.constant 0 : index
    %8 = vector.load %arg5[%c0_3, %c0_4] : memref<2x32xf32, #tpu.memory_space<vmem>>, vector<2x32xf32>
    %9 = vector.extract_strided_slice %8 {offsets = [0, 0], sizes = [1, 32], strides = [1, 1]} : vector<2x32xf32> to vector<1x32xf32>
    %10 = vector.extract_strided_slice %8 {offsets = [1, 0], sizes = [1, 32], strides = [1, 1]} : vector<2x32xf32> to vector<1x32xf32>
    %c0_5 = arith.constant 0 : index
    %c0_6 = arith.constant 0 : index
    %11 = vector.load %arg1[%c0_5, %c0_6] : memref<4x1xi32, #tpu.memory_space<vmem>>, vector<4x1xi32>
    %c4_i32 = arith.constant 4 : i32
    %12 = arith.muli %arg0, %c4_i32 : i32
    %c0_7 = arith.constant 0 : index
    %c0_8 = arith.constant 0 : index
    %13 = vector.load %arg9[%c0_7, %c0_8] : memref<4x32xf32, #tpu.memory_space<vmem>>, vector<4x32xf32>
    %c0_9 = arith.constant 0 : index
    %c0_10 = arith.constant 0 : index
    %14 = vector.load %arg10[%c0_9, %c0_10] : memref<4x32xf32, #tpu.memory_space<vmem>>, vector<4x32xf32>
    %c0_i32_11 = arith.constant 0 : i32
    %15 = arith.addi %12, %c0_i32_11 : i32
    %16 = arith.index_cast %c0_i32_11 : i32 to index
    %c0_12 = arith.constant 0 : index
    %c0_13 = arith.constant 0 : index
    %17 = vector.load %arg2[%16, %c0_12, %c0_13] : memref<4x4x96xbf16, #tpu.memory_space<vmem>>, vector<1x4x96xbf16>
    %18 = vector.shape_cast %17 : vector<1x4x96xbf16> to vector<4x96xbf16>
    %19 = arith.extf %18 : vector<4x96xbf16> to vector<4x96xf32>
    %20 = arith.truncf %13 : vector<4x32xf32> to vector<4x32xbf16>
    %cst = arith.constant dense<0.000000e+00> : vector<4x96xf32>
    %21 = tpu.matmul %20, %5, %cst {dimension_numbers = #tpu.dot_dimension_numbers<[1], [0], [0], [1], [0, 0, 1, 1], [], []>} : vector<4x32xbf16>, vector<32x96xbf16>, vector<4x96xf32> -> vector<4x96xf32>
    %22 = vector.extract_strided_slice %19 {offsets = [0, 0], sizes = [4, 32], strides = [1, 1]} : vector<4x96xf32> to vector<4x32xf32>
    %23 = vector.extract_strided_slice %21 {offsets = [0, 0], sizes = [4, 32], strides = [1, 1]} : vector<4x96xf32> to vector<4x32xf32>
    %24 = arith.addf %22, %23 : vector<4x32xf32>
    %25 = arith.negf %24 : vector<4x32xf32>
    %26 = math.exp %25 : vector<4x32xf32>
    %cst_14 = arith.constant 1.000000e+00 : f32
    %27 = vector.broadcast %cst_14 : f32 to vector<4x32xf32>
    %28 = arith.addf %27, %26 : vector<4x32xf32>
    %29 = arith.divf %27, %28 : vector<4x32xf32>
    %30 = vector.extract_strided_slice %19 {offsets = [0, 32], sizes = [4, 32], strides = [1, 1]} : vector<4x96xf32> to vector<4x32xf32>
    %31 = vector.extract_strided_slice %21 {offsets = [0, 32], sizes = [4, 32], strides = [1, 1]} : vector<4x96xf32> to vector<4x32xf32>
    %32 = arith.addf %30, %31 : vector<4x32xf32>
    %33 = arith.negf %32 : vector<4x32xf32>
    %34 = math.exp %33 : vector<4x32xf32>
    %cst_15 = arith.constant 1.000000e+00 : f32
    %35 = vector.broadcast %cst_15 : f32 to vector<4x32xf32>
    %36 = arith.addf %35, %34 : vector<4x32xf32>
    %37 = arith.divf %35, %36 : vector<4x32xf32>
    %38 = vector.extract_strided_slice %19 {offsets = [0, 64], sizes = [4, 32], strides = [1, 1]} : vector<4x96xf32> to vector<4x32xf32>
    %39 = vector.extract_strided_slice %21 {offsets = [0, 64], sizes = [4, 32], strides = [1, 1]} : vector<4x96xf32> to vector<4x32xf32>
    %40 = vector.broadcast %9 : vector<1x32xf32> to vector<4x32xf32>
    %41 = arith.addf %39, %40 : vector<4x32xf32>
    %42 = arith.mulf %29, %41 : vector<4x32xf32>
    %43 = arith.addf %38, %42 : vector<4x32xf32>
    %44 = math.tanh %43 : vector<4x32xf32>
    %cst_16 = arith.constant 1.000000e+00 : f32
    %45 = vector.broadcast %cst_16 : f32 to vector<4x32xf32>
    %46 = arith.subf %45, %37 : vector<4x32xf32>
    %47 = arith.mulf %46, %44 : vector<4x32xf32>
    %48 = arith.mulf %37, %13 : vector<4x32xf32>
    %49 = arith.addf %47, %48 : vector<4x32xf32>
    %50 = vector.broadcast %15 : i32 to vector<4x1xi32>
    %51 = arith.cmpi slt, %50, %11 : vector<4x1xi32>
    %52 = vector.shape_cast %51 : vector<4x1xi1> to vector<4x1xi1>
    %53 = vector.broadcast %52 : vector<4x1xi1> to vector<4x32xi1>
    %54 = arith.select %53, %49, %13 : vector<4x32xi1>, vector<4x32xf32>
    %cst_17 = arith.constant 0.000000e+00 : f32
    %55 = vector.shape_cast %51 : vector<4x1xi1> to vector<4x1xi1>
    %56 = vector.broadcast %55 : vector<4x1xi1> to vector<4x32xi1>
    %57 = vector.broadcast %cst_17 : f32 to vector<4x32xf32>
    %58 = arith.select %56, %54, %57 : vector<4x32xi1>, vector<4x32xf32>
    %59 = arith.truncf %58 : vector<4x32xf32> to vector<4x32xbf16>
    %60 = arith.index_cast %c0_i32_11 : i32 to index
    %c0_18 = arith.constant 0 : index
    %c0_19 = arith.constant 0 : index
    %61 = vector.load %arg6[%60, %c0_18, %c0_19] : memref<4x4x32xbf16, #tpu.memory_space<vmem>>, vector<1x4x32xbf16>
    %62 = vector.shape_cast %61 : vector<1x4x32xbf16> to vector<4x32xbf16>
    %63 = vector.shape_cast %59 : vector<4x32xbf16> to vector<1x4x32xbf16>
    tpu.vector_store %arg6[%60, %c0_18, %c0_19], %63 {strides = array<i32>} : memref<4x4x32xbf16, #tpu.memory_space<vmem>>, vector<1x4x32xbf16>,
    %c3_i32 = arith.constant 3 : i32
    %64 = arith.subi %c3_i32, %c0_i32_11 : i32
    %65 = arith.index_cast %64 : i32 to index
    %c0_20 = arith.constant 0 : index
    %c0_21 = arith.constant 0 : index
    %66 = vector.load %arg3[%65, %c0_20, %c0_21] : memref<4x4x96xbf16, #tpu.memory_space<vmem>>, vector<1x4x96xbf16>
    %67 = vector.shape_cast %66 : vector<1x4x96xbf16> to vector<4x96xbf16>
    %68 = arith.extf %67 : vector<4x96xbf16> to vector<4x96xf32>
    %69 = arith.truncf %14 : vector<4x32xf32> to vector<4x32xbf16>
    %cst_22 = arith.constant dense<0.000000e+00> : vector<4x96xf32>
    %70 = tpu.matmul %69, %7, %cst_22 {dimension_numbers = #tpu.dot_dimension_numbers<[1], [0], [0], [1], [0, 0, 1, 1], [], []>} : vector<4x32xbf16>, vector<32x96xbf16>, vector<4x96xf32> -> vector<4x96xf32>
    %71 = vector.extract_strided_slice %68 {offsets = [0, 0], sizes = [4, 32], strides = [1, 1]} : vector<4x96xf32> to vector<4x32xf32>
    %72 = vector.extract_strided_slice %70 {offsets = [0, 0], sizes = [4, 32], strides = [1, 1]} : vector<4x96xf32> to vector<4x32xf32>
    %73 = arith.addf %71, %72 : vector<4x32xf32>
    %74 = arith.negf %73 : vector<4x32xf32>
    %75 = math.exp %74 : vector<4x32xf32>
    %cst_23 = arith.constant 1.000000e+00 : f32
    %76 = vector.broadcast %cst_23 : f32 to vector<4x32xf32>
    %77 = arith.addf %76, %75 : vector<4x32xf32>
    %78 = arith.divf %76, %77 : vector<4x32xf32>
    %79 = vector.extract_strided_slice %68 {offsets = [0, 32], sizes = [4, 32], strides = [1, 1]} : vector<4x96xf32> to vector<4x32xf32>
    %80 = vector.extract_strided_slice %70 {offsets = [0, 32], sizes = [4, 32], strides = [1, 1]} : vector<4x96xf32> to vector<4x32xf32>
    %81 = arith.addf %79, %80 : vector<4x32xf32>
    %82 = arith.negf %81 : vector<4x32xf32>
    %83 = math.exp %82 : vector<4x32xf32>
    %cst_24 = arith.constant 1.000000e+00 : f32
    %84 = vector.broadcast %cst_24 : f32 to vector<4x32xf32>
    %85 = arith.addf %84, %83 : vector<4x32xf32>
    %86 = arith.divf %84, %85 : vector<4x32xf32>
    %87 = vector.extract_strided_slice %68 {offsets = [0, 64], sizes = [4, 32], strides = [1, 1]} : vector<4x96xf32> to vector<4x32xf32>
    %88 = vector.extract_strided_slice %70 {offsets = [0, 64], sizes = [4, 32], strides = [1, 1]} : vector<4x96xf32> to vector<4x32xf32>
    %89 = vector.broadcast %10 : vector<1x32xf32> to vector<4x32xf32>
    %90 = arith.addf %88, %89 : vector<4x32xf32>
    %91 = arith.mulf %78, %90 : vector<4x32xf32>
    %92 = arith.addf %87, %91 : vector<4x32xf32>
    %93 = math.tanh %92 : vector<4x32xf32>
    %cst_25 = arith.constant 1.000000e+00 : f32
    %94 = vector.broadcast %cst_25 : f32 to vector<4x32xf32>
    %95 = arith.subf %94, %86 : vector<4x32xf32>
    %96 = arith.mulf %95, %93 : vector<4x32xf32>
    %97 = arith.mulf %86, %14 : vector<4x32xf32>
    %98 = arith.addf %96, %97 : vector<4x32xf32>
    %c7_i32 = arith.constant 7 : i32
    %99 = arith.subi %c7_i32, %15 : i32
    %100 = vector.broadcast %99 : i32 to vector<4x1xi32>
    %101 = arith.cmpi slt, %100, %11 : vector<4x1xi32>
    %102 = vector.shape_cast %101 : vector<4x1xi1> to vector<4x1xi1>
    %103 = vector.broadcast %102 : vector<4x1xi1> to vector<4x32xi1>
    %104 = arith.select %103, %98, %14 : vector<4x32xi1>, vector<4x32xf32>
    %cst_26 = arith.constant 0.000000e+00 : f32
    %105 = vector.shape_cast %101 : vector<4x1xi1> to vector<4x1xi1>
    %106 = vector.broadcast %105 : vector<4x1xi1> to vector<4x32xi1>
    %107 = vector.broadcast %cst_26 : f32 to vector<4x32xf32>
    %108 = arith.select %106, %104, %107 : vector<4x32xi1>, vector<4x32xf32>
    %109 = arith.truncf %108 : vector<4x32xf32> to vector<4x32xbf16>
    %110 = arith.index_cast %64 : i32 to index
    %c0_27 = arith.constant 0 : index
    %c0_28 = arith.constant 0 : index
    %111 = vector.load %arg7[%110, %c0_27, %c0_28] : memref<4x4x32xbf16, #tpu.memory_space<vmem>>, vector<1x4x32xbf16>
    %112 = vector.shape_cast %111 : vector<1x4x32xbf16> to vector<4x32xbf16>
    %113 = vector.shape_cast %109 : vector<4x32xbf16> to vector<1x4x32xbf16>
    tpu.vector_store %arg7[%110, %c0_27, %c0_28], %113 {strides = array<i32>} : memref<4x4x32xbf16, #tpu.memory_space<vmem>>, vector<1x4x32xbf16>,
    %c1_i32 = arith.constant 1 : i32
    %114 = arith.addi %12, %c1_i32 : i32
    %115 = arith.index_cast %c1_i32 : i32 to index
    %c0_29 = arith.constant 0 : index
    %c0_30 = arith.constant 0 : index
    %116 = vector.load %arg2[%115, %c0_29, %c0_30] : memref<4x4x96xbf16, #tpu.memory_space<vmem>>, vector<1x4x96xbf16>
    %117 = vector.shape_cast %116 : vector<1x4x96xbf16> to vector<4x96xbf16>
    %118 = arith.extf %117 : vector<4x96xbf16> to vector<4x96xf32>
    %119 = arith.truncf %54 : vector<4x32xf32> to vector<4x32xbf16>
    %cst_31 = arith.constant dense<0.000000e+00> : vector<4x96xf32>
    %120 = tpu.matmul %119, %5, %cst_31 {dimension_numbers = #tpu.dot_dimension_numbers<[1], [0], [0], [1], [0, 0, 1, 1], [], []>} : vector<4x32xbf16>, vector<32x96xbf16>, vector<4x96xf32> -> vector<4x96xf32>
    %121 = vector.extract_strided_slice %118 {offsets = [0, 0], sizes = [4, 32], strides = [1, 1]} : vector<4x96xf32> to vector<4x32xf32>
    %122 = vector.extract_strided_slice %120 {offsets = [0, 0], sizes = [4, 32], strides = [1, 1]} : vector<4x96xf32> to vector<4x32xf32>
    %123 = arith.addf %121, %122 : vector<4x32xf32>
    %124 = arith.negf %123 : vector<4x32xf32>
    %125 = math.exp %124 : vector<4x32xf32>
    %cst_32 = arith.constant 1.000000e+00 : f32
    %126 = vector.broadcast %cst_32 : f32 to vector<4x32xf32>
    %127 = arith.addf %126, %125 : vector<4x32xf32>
    %128 = arith.divf %126, %127 : vector<4x32xf32>
    %129 = vector.extract_strided_slice %118 {offsets = [0, 32], sizes = [4, 32], strides = [1, 1]} : vector<4x96xf32> to vector<4x32xf32>
    %130 = vector.extract_strided_slice %120 {offsets = [0, 32], sizes = [4, 32], strides = [1, 1]} : vector<4x96xf32> to vector<4x32xf32>
    %131 = arith.addf %129, %130 : vector<4x32xf32>
    %132 = arith.negf %131 : vector<4x32xf32>
    %133 = math.exp %132 : vector<4x32xf32>
    %cst_33 = arith.constant 1.000000e+00 : f32
    %134 = vector.broadcast %cst_33 : f32 to vector<4x32xf32>
    %135 = arith.addf %134, %133 : vector<4x32xf32>
    %136 = arith.divf %134, %135 : vector<4x32xf32>
    %137 = vector.extract_strided_slice %118 {offsets = [0, 64], sizes = [4, 32], strides = [1, 1]} : vector<4x96xf32> to vector<4x32xf32>
    %138 = vector.extract_strided_slice %120 {offsets = [0, 64], sizes = [4, 32], strides = [1, 1]} : vector<4x96xf32> to vector<4x32xf32>
    %139 = vector.broadcast %9 : vector<1x32xf32> to vector<4x32xf32>
    %140 = arith.addf %138, %139 : vector<4x32xf32>
    %141 = arith.mulf %128, %140 : vector<4x32xf32>
    %142 = arith.addf %137, %141 : vector<4x32xf32>
    %143 = math.tanh %142 : vector<4x32xf32>
    %cst_34 = arith.constant 1.000000e+00 : f32
    %144 = vector.broadcast %cst_34 : f32 to vector<4x32xf32>
    %145 = arith.subf %144, %136 : vector<4x32xf32>
    %146 = arith.mulf %145, %143 : vector<4x32xf32>
    %147 = arith.mulf %136, %54 : vector<4x32xf32>
    %148 = arith.addf %146, %147 : vector<4x32xf32>
    %149 = vector.broadcast %114 : i32 to vector<4x1xi32>
    %150 = arith.cmpi slt, %149, %11 : vector<4x1xi32>
    %151 = vector.shape_cast %150 : vector<4x1xi1> to vector<4x1xi1>
    %152 = vector.broadcast %151 : vector<4x1xi1> to vector<4x32xi1>
    %153 = arith.select %152, %148, %54 : vector<4x32xi1>, vector<4x32xf32>
    %cst_35 = arith.constant 0.000000e+00 : f32
    %154 = vector.shape_cast %150 : vector<4x1xi1> to vector<4x1xi1>
    %155 = vector.broadcast %154 : vector<4x1xi1> to vector<4x32xi1>
    %156 = vector.broadcast %cst_35 : f32 to vector<4x32xf32>
    %157 = arith.select %155, %153, %156 : vector<4x32xi1>, vector<4x32xf32>
    %158 = arith.truncf %157 : vector<4x32xf32> to vector<4x32xbf16>
    %159 = arith.index_cast %c1_i32 : i32 to index
    %c0_36 = arith.constant 0 : index
    %c0_37 = arith.constant 0 : index
    %160 = vector.load %arg6[%159, %c0_36, %c0_37] : memref<4x4x32xbf16, #tpu.memory_space<vmem>>, vector<1x4x32xbf16>
    %161 = vector.shape_cast %160 : vector<1x4x32xbf16> to vector<4x32xbf16>
    %162 = vector.shape_cast %158 : vector<4x32xbf16> to vector<1x4x32xbf16>
    tpu.vector_store %arg6[%159, %c0_36, %c0_37], %162 {strides = array<i32>} : memref<4x4x32xbf16, #tpu.memory_space<vmem>>, vector<1x4x32xbf16>,
    %c3_i32_38 = arith.constant 3 : i32
    %163 = arith.subi %c3_i32_38, %c1_i32 : i32
    %164 = arith.index_cast %163 : i32 to index
    %c0_39 = arith.constant 0 : index
    %c0_40 = arith.constant 0 : index
    %165 = vector.load %arg3[%164, %c0_39, %c0_40] : memref<4x4x96xbf16, #tpu.memory_space<vmem>>, vector<1x4x96xbf16>
    %166 = vector.shape_cast %165 : vector<1x4x96xbf16> to vector<4x96xbf16>
    %167 = arith.extf %166 : vector<4x96xbf16> to vector<4x96xf32>
    %168 = arith.truncf %104 : vector<4x32xf32> to vector<4x32xbf16>
    %cst_41 = arith.constant dense<0.000000e+00> : vector<4x96xf32>
    %169 = tpu.matmul %168, %7, %cst_41 {dimension_numbers = #tpu.dot_dimension_numbers<[1], [0], [0], [1], [0, 0, 1, 1], [], []>} : vector<4x32xbf16>, vector<32x96xbf16>, vector<4x96xf32> -> vector<4x96xf32>
    %170 = vector.extract_strided_slice %167 {offsets = [0, 0], sizes = [4, 32], strides = [1, 1]} : vector<4x96xf32> to vector<4x32xf32>
    %171 = vector.extract_strided_slice %169 {offsets = [0, 0], sizes = [4, 32], strides = [1, 1]} : vector<4x96xf32> to vector<4x32xf32>
    %172 = arith.addf %170, %171 : vector<4x32xf32>
    %173 = arith.negf %172 : vector<4x32xf32>
    %174 = math.exp %173 : vector<4x32xf32>
    %cst_42 = arith.constant 1.000000e+00 : f32
    %175 = vector.broadcast %cst_42 : f32 to vector<4x32xf32>
    %176 = arith.addf %175, %174 : vector<4x32xf32>
    %177 = arith.divf %175, %176 : vector<4x32xf32>
    %178 = vector.extract_strided_slice %167 {offsets = [0, 32], sizes = [4, 32], strides = [1, 1]} : vector<4x96xf32> to vector<4x32xf32>
    %179 = vector.extract_strided_slice %169 {offsets = [0, 32], sizes = [4, 32], strides = [1, 1]} : vector<4x96xf32> to vector<4x32xf32>
    %180 = arith.addf %178, %179 : vector<4x32xf32>
    %181 = arith.negf %180 : vector<4x32xf32>
    %182 = math.exp %181 : vector<4x32xf32>
    %cst_43 = arith.constant 1.000000e+00 : f32
    %183 = vector.broadcast %cst_43 : f32 to vector<4x32xf32>
    %184 = arith.addf %183, %182 : vector<4x32xf32>
    %185 = arith.divf %183, %184 : vector<4x32xf32>
    %186 = vector.extract_strided_slice %167 {offsets = [0, 64], sizes = [4, 32], strides = [1, 1]} : vector<4x96xf32> to vector<4x32xf32>
    %187 = vector.extract_strided_slice %169 {offsets = [0, 64], sizes = [4, 32], strides = [1, 1]} : vector<4x96xf32> to vector<4x32xf32>
    %188 = vector.broadcast %10 : vector<1x32xf32> to vector<4x32xf32>
    %189 = arith.addf %187, %188 : vector<4x32xf32>
    %190 = arith.mulf %177, %189 : vector<4x32xf32>
    %191 = arith.addf %186, %190 : vector<4x32xf32>
    %192 = math.tanh %191 : vector<4x32xf32>
    %cst_44 = arith.constant 1.000000e+00 : f32
    %193 = vector.broadcast %cst_44 : f32 to vector<4x32xf32>
    %194 = arith.subf %193, %185 : vector<4x32xf32>
    %195 = arith.mulf %194, %192 : vector<4x32xf32>
    %196 = arith.mulf %185, %104 : vector<4x32xf32>
    %197 = arith.addf %195, %196 : vector<4x32xf32>
    %c7_i32_45 = arith.constant 7 : i32
    %198 = arith.subi %c7_i32_45, %114 : i32
    %199 = vector.broadcast %198 : i32 to vector<4x1xi32>
    %200 = arith.cmpi slt, %199, %11 : vector<4x1xi32>
    %201 = vector.shape_cast %200 : vector<4x1xi1> to vector<4x1xi1>
    %202 = vector.broadcast %201 : vector<4x1xi1> to vector<4x32xi1>
    %203 = arith.select %202, %197, %104 : vector<4x32xi1>, vector<4x32xf32>
    %cst_46 = arith.constant 0.000000e+00 : f32
    %204 = vector.shape_cast %200 : vector<4x1xi1> to vector<4x1xi1>
    %205 = vector.broadcast %204 : vector<4x1xi1> to vector<4x32xi1>
    %206 = vector.broadcast %cst_46 : f32 to vector<4x32xf32>
    %207 = arith.select %205, %203, %206 : vector<4x32xi1>, vector<4x32xf32>
    %208 = arith.truncf %207 : vector<4x32xf32> to vector<4x32xbf16>
    %209 = arith.index_cast %163 : i32 to index
    %c0_47 = arith.constant 0 : index
    %c0_48 = arith.constant 0 : index
    %210 = vector.load %arg7[%209, %c0_47, %c0_48] : memref<4x4x32xbf16, #tpu.memory_space<vmem>>, vector<1x4x32xbf16>
    %211 = vector.shape_cast %210 : vector<1x4x32xbf16> to vector<4x32xbf16>
    %212 = vector.shape_cast %208 : vector<4x32xbf16> to vector<1x4x32xbf16>
    tpu.vector_store %arg7[%209, %c0_47, %c0_48], %212 {strides = array<i32>} : memref<4x4x32xbf16, #tpu.memory_space<vmem>>, vector<1x4x32xbf16>,
    %c2_i32 = arith.constant 2 : i32
    %213 = arith.addi %12, %c2_i32 : i32
    %214 = arith.index_cast %c2_i32 : i32 to index
    %c0_49 = arith.constant 0 : index
    %c0_50 = arith.constant 0 : index
    %215 = vector.load %arg2[%214, %c0_49, %c0_50] : memref<4x4x96xbf16, #tpu.memory_space<vmem>>, vector<1x4x96xbf16>
    %216 = vector.shape_cast %215 : vector<1x4x96xbf16> to vector<4x96xbf16>
    %217 = arith.extf %216 : vector<4x96xbf16> to vector<4x96xf32>
    %218 = arith.truncf %153 : vector<4x32xf32> to vector<4x32xbf16>
    %cst_51 = arith.constant dense<0.000000e+00> : vector<4x96xf32>
    %219 = tpu.matmul %218, %5, %cst_51 {dimension_numbers = #tpu.dot_dimension_numbers<[1], [0], [0], [1], [0, 0, 1, 1], [], []>} : vector<4x32xbf16>, vector<32x96xbf16>, vector<4x96xf32> -> vector<4x96xf32>
    %220 = vector.extract_strided_slice %217 {offsets = [0, 0], sizes = [4, 32], strides = [1, 1]} : vector<4x96xf32> to vector<4x32xf32>
    %221 = vector.extract_strided_slice %219 {offsets = [0, 0], sizes = [4, 32], strides = [1, 1]} : vector<4x96xf32> to vector<4x32xf32>
    %222 = arith.addf %220, %221 : vector<4x32xf32>
    %223 = arith.negf %222 : vector<4x32xf32>
    %224 = math.exp %223 : vector<4x32xf32>
    %cst_52 = arith.constant 1.000000e+00 : f32
    %225 = vector.broadcast %cst_52 : f32 to vector<4x32xf32>
    %226 = arith.addf %225, %224 : vector<4x32xf32>
    %227 = arith.divf %225, %226 : vector<4x32xf32>
    %228 = vector.extract_strided_slice %217 {offsets = [0, 32], sizes = [4, 32], strides = [1, 1]} : vector<4x96xf32> to vector<4x32xf32>
    %229 = vector.extract_strided_slice %219 {offsets = [0, 32], sizes = [4, 32], strides = [1, 1]} : vector<4x96xf32> to vector<4x32xf32>
    %230 = arith.addf %228, %229 : vector<4x32xf32>
    %231 = arith.negf %230 : vector<4x32xf32>
    %232 = math.exp %231 : vector<4x32xf32>
    %cst_53 = arith.constant 1.000000e+00 : f32
    %233 = vector.broadcast %cst_53 : f32 to vector<4x32xf32>
    %234 = arith.addf %233, %232 : vector<4x32xf32>
    %235 = arith.divf %233, %234 : vector<4x32xf32>
    %236 = vector.extract_strided_slice %217 {offsets = [0, 64], sizes = [4, 32], strides = [1, 1]} : vector<4x96xf32> to vector<4x32xf32>
    %237 = vector.extract_strided_slice %219 {offsets = [0, 64], sizes = [4, 32], strides = [1, 1]} : vector<4x96xf32> to vector<4x32xf32>
    %238 = vector.broadcast %9 : vector<1x32xf32> to vector<4x32xf32>
    %239 = arith.addf %237, %238 : vector<4x32xf32>
    %240 = arith.mulf %227, %239 : vector<4x32xf32>
    %241 = arith.addf %236, %240 : vector<4x32xf32>
    %242 = math.tanh %241 : vector<4x32xf32>
    %cst_54 = arith.constant 1.000000e+00 : f32
    %243 = vector.broadcast %cst_54 : f32 to vector<4x32xf32>
    %244 = arith.subf %243, %235 : vector<4x32xf32>
    %245 = arith.mulf %244, %242 : vector<4x32xf32>
    %246 = arith.mulf %235, %153 : vector<4x32xf32>
    %247 = arith.addf %245, %246 : vector<4x32xf32>
    %248 = vector.broadcast %213 : i32 to vector<4x1xi32>
    %249 = arith.cmpi slt, %248, %11 : vector<4x1xi32>
    %250 = vector.shape_cast %249 : vector<4x1xi1> to vector<4x1xi1>
    %251 = vector.broadcast %250 : vector<4x1xi1> to vector<4x32xi1>
    %252 = arith.select %251, %247, %153 : vector<4x32xi1>, vector<4x32xf32>
    %cst_55 = arith.constant 0.000000e+00 : f32
    %253 = vector.shape_cast %249 : vector<4x1xi1> to vector<4x1xi1>
    %254 = vector.broadcast %253 : vector<4x1xi1> to vector<4x32xi1>
    %255 = vector.broadcast %cst_55 : f32 to vector<4x32xf32>
    %256 = arith.select %254, %252, %255 : vector<4x32xi1>, vector<4x32xf32>
    %257 = arith.truncf %256 : vector<4x32xf32> to vector<4x32xbf16>
    %258 = arith.index_cast %c2_i32 : i32 to index
    %c0_56 = arith.constant 0 : index
    %c0_57 = arith.constant 0 : index
    %259 = vector.load %arg6[%258, %c0_56, %c0_57] : memref<4x4x32xbf16, #tpu.memory_space<vmem>>, vector<1x4x32xbf16>
    %260 = vector.shape_cast %259 : vector<1x4x32xbf16> to vector<4x32xbf16>
    %261 = vector.shape_cast %257 : vector<4x32xbf16> to vector<1x4x32xbf16>
    tpu.vector_store %arg6[%258, %c0_56, %c0_57], %261 {strides = array<i32>} : memref<4x4x32xbf16, #tpu.memory_space<vmem>>, vector<1x4x32xbf16>,
    %c3_i32_58 = arith.constant 3 : i32
    %262 = arith.subi %c3_i32_58, %c2_i32 : i32
    %263 = arith.index_cast %262 : i32 to index
    %c0_59 = arith.constant 0 : index
    %c0_60 = arith.constant 0 : index
    %264 = vector.load %arg3[%263, %c0_59, %c0_60] : memref<4x4x96xbf16, #tpu.memory_space<vmem>>, vector<1x4x96xbf16>
    %265 = vector.shape_cast %264 : vector<1x4x96xbf16> to vector<4x96xbf16>
    %266 = arith.extf %265 : vector<4x96xbf16> to vector<4x96xf32>
    %267 = arith.truncf %203 : vector<4x32xf32> to vector<4x32xbf16>
    %cst_61 = arith.constant dense<0.000000e+00> : vector<4x96xf32>
    %268 = tpu.matmul %267, %7, %cst_61 {dimension_numbers = #tpu.dot_dimension_numbers<[1], [0], [0], [1], [0, 0, 1, 1], [], []>} : vector<4x32xbf16>, vector<32x96xbf16>, vector<4x96xf32> -> vector<4x96xf32>
    %269 = vector.extract_strided_slice %266 {offsets = [0, 0], sizes = [4, 32], strides = [1, 1]} : vector<4x96xf32> to vector<4x32xf32>
    %270 = vector.extract_strided_slice %268 {offsets = [0, 0], sizes = [4, 32], strides = [1, 1]} : vector<4x96xf32> to vector<4x32xf32>
    %271 = arith.addf %269, %270 : vector<4x32xf32>
    %272 = arith.negf %271 : vector<4x32xf32>
    %273 = math.exp %272 : vector<4x32xf32>
    %cst_62 = arith.constant 1.000000e+00 : f32
    %274 = vector.broadcast %cst_62 : f32 to vector<4x32xf32>
    %275 = arith.addf %274, %273 : vector<4x32xf32>
    %276 = arith.divf %274, %275 : vector<4x32xf32>
    %277 = vector.extract_strided_slice %266 {offsets = [0, 32], sizes = [4, 32], strides = [1, 1]} : vector<4x96xf32> to vector<4x32xf32>
    %278 = vector.extract_strided_slice %268 {offsets = [0, 32], sizes = [4, 32], strides = [1, 1]} : vector<4x96xf32> to vector<4x32xf32>
    %279 = arith.addf %277, %278 : vector<4x32xf32>
    %280 = arith.negf %279 : vector<4x32xf32>
    %281 = math.exp %280 : vector<4x32xf32>
    %cst_63 = arith.constant 1.000000e+00 : f32
    %282 = vector.broadcast %cst_63 : f32 to vector<4x32xf32>
    %283 = arith.addf %282, %281 : vector<4x32xf32>
    %284 = arith.divf %282, %283 : vector<4x32xf32>
    %285 = vector.extract_strided_slice %266 {offsets = [0, 64], sizes = [4, 32], strides = [1, 1]} : vector<4x96xf32> to vector<4x32xf32>
    %286 = vector.extract_strided_slice %268 {offsets = [0, 64], sizes = [4, 32], strides = [1, 1]} : vector<4x96xf32> to vector<4x32xf32>
    %287 = vector.broadcast %10 : vector<1x32xf32> to vector<4x32xf32>
    %288 = arith.addf %286, %287 : vector<4x32xf32>
    %289 = arith.mulf %276, %288 : vector<4x32xf32>
    %290 = arith.addf %285, %289 : vector<4x32xf32>
    %291 = math.tanh %290 : vector<4x32xf32>
    %cst_64 = arith.constant 1.000000e+00 : f32
    %292 = vector.broadcast %cst_64 : f32 to vector<4x32xf32>
    %293 = arith.subf %292, %284 : vector<4x32xf32>
    %294 = arith.mulf %293, %291 : vector<4x32xf32>
    %295 = arith.mulf %284, %203 : vector<4x32xf32>
    %296 = arith.addf %294, %295 : vector<4x32xf32>
    %c7_i32_65 = arith.constant 7 : i32
    %297 = arith.subi %c7_i32_65, %213 : i32
    %298 = vector.broadcast %297 : i32 to vector<4x1xi32>
    %299 = arith.cmpi slt, %298, %11 : vector<4x1xi32>
    %300 = vector.shape_cast %299 : vector<4x1xi1> to vector<4x1xi1>
    %301 = vector.broadcast %300 : vector<4x1xi1> to vector<4x32xi1>
    %302 = arith.select %301, %296, %203 : vector<4x32xi1>, vector<4x32xf32>
    %cst_66 = arith.constant 0.000000e+00 : f32
    %303 = vector.shape_cast %299 : vector<4x1xi1> to vector<4x1xi1>
    %304 = vector.broadcast %303 : vector<4x1xi1> to vector<4x32xi1>
    %305 = vector.broadcast %cst_66 : f32 to vector<4x32xf32>
    %306 = arith.select %304, %302, %305 : vector<4x32xi1>, vector<4x32xf32>
    %307 = arith.truncf %306 : vector<4x32xf32> to vector<4x32xbf16>
    %308 = arith.index_cast %262 : i32 to index
    %c0_67 = arith.constant 0 : index
    %c0_68 = arith.constant 0 : index
    %309 = vector.load %arg7[%308, %c0_67, %c0_68] : memref<4x4x32xbf16, #tpu.memory_space<vmem>>, vector<1x4x32xbf16>
    %310 = vector.shape_cast %309 : vector<1x4x32xbf16> to vector<4x32xbf16>
    %311 = vector.shape_cast %307 : vector<4x32xbf16> to vector<1x4x32xbf16>
    tpu.vector_store %arg7[%308, %c0_67, %c0_68], %311 {strides = array<i32>} : memref<4x4x32xbf16, #tpu.memory_space<vmem>>, vector<1x4x32xbf16>,
    %c3_i32_69 = arith.constant 3 : i32
    %312 = arith.addi %12, %c3_i32_69 : i32
    %313 = arith.index_cast %c3_i32_69 : i32 to index
    %c0_70 = arith.constant 0 : index
    %c0_71 = arith.constant 0 : index
    %314 = vector.load %arg2[%313, %c0_70, %c0_71] : memref<4x4x96xbf16, #tpu.memory_space<vmem>>, vector<1x4x96xbf16>
    %315 = vector.shape_cast %314 : vector<1x4x96xbf16> to vector<4x96xbf16>
    %316 = arith.extf %315 : vector<4x96xbf16> to vector<4x96xf32>
    %317 = arith.truncf %252 : vector<4x32xf32> to vector<4x32xbf16>
    %cst_72 = arith.constant dense<0.000000e+00> : vector<4x96xf32>
    %318 = tpu.matmul %317, %5, %cst_72 {dimension_numbers = #tpu.dot_dimension_numbers<[1], [0], [0], [1], [0, 0, 1, 1], [], []>} : vector<4x32xbf16>, vector<32x96xbf16>, vector<4x96xf32> -> vector<4x96xf32>
    %319 = vector.extract_strided_slice %316 {offsets = [0, 0], sizes = [4, 32], strides = [1, 1]} : vector<4x96xf32> to vector<4x32xf32>
    %320 = vector.extract_strided_slice %318 {offsets = [0, 0], sizes = [4, 32], strides = [1, 1]} : vector<4x96xf32> to vector<4x32xf32>
    %321 = arith.addf %319, %320 : vector<4x32xf32>
    %322 = arith.negf %321 : vector<4x32xf32>
    %323 = math.exp %322 : vector<4x32xf32>
    %cst_73 = arith.constant 1.000000e+00 : f32
    %324 = vector.broadcast %cst_73 : f32 to vector<4x32xf32>
    %325 = arith.addf %324, %323 : vector<4x32xf32>
    %326 = arith.divf %324, %325 : vector<4x32xf32>
    %327 = vector.extract_strided_slice %316 {offsets = [0, 32], sizes = [4, 32], strides = [1, 1]} : vector<4x96xf32> to vector<4x32xf32>
    %328 = vector.extract_strided_slice %318 {offsets = [0, 32], sizes = [4, 32], strides = [1, 1]} : vector<4x96xf32> to vector<4x32xf32>
    %329 = arith.addf %327, %328 : vector<4x32xf32>
    %330 = arith.negf %329 : vector<4x32xf32>
    %331 = math.exp %330 : vector<4x32xf32>
    %cst_74 = arith.constant 1.000000e+00 : f32
    %332 = vector.broadcast %cst_74 : f32 to vector<4x32xf32>
    %333 = arith.addf %332, %331 : vector<4x32xf32>
    %334 = arith.divf %332, %333 : vector<4x32xf32>
    %335 = vector.extract_strided_slice %316 {offsets = [0, 64], sizes = [4, 32], strides = [1, 1]} : vector<4x96xf32> to vector<4x32xf32>
    %336 = vector.extract_strided_slice %318 {offsets = [0, 64], sizes = [4, 32], strides = [1, 1]} : vector<4x96xf32> to vector<4x32xf32>
    %337 = vector.broadcast %9 : vector<1x32xf32> to vector<4x32xf32>
    %338 = arith.addf %336, %337 : vector<4x32xf32>
    %339 = arith.mulf %326, %338 : vector<4x32xf32>
    %340 = arith.addf %335, %339 : vector<4x32xf32>
    %341 = math.tanh %340 : vector<4x32xf32>
    %cst_75 = arith.constant 1.000000e+00 : f32
    %342 = vector.broadcast %cst_75 : f32 to vector<4x32xf32>
    %343 = arith.subf %342, %334 : vector<4x32xf32>
    %344 = arith.mulf %343, %341 : vector<4x32xf32>
    %345 = arith.mulf %334, %252 : vector<4x32xf32>
    %346 = arith.addf %344, %345 : vector<4x32xf32>
    %347 = vector.broadcast %312 : i32 to vector<4x1xi32>
    %348 = arith.cmpi slt, %347, %11 : vector<4x1xi32>
    %349 = vector.shape_cast %348 : vector<4x1xi1> to vector<4x1xi1>
    %350 = vector.broadcast %349 : vector<4x1xi1> to vector<4x32xi1>
    %351 = arith.select %350, %346, %252 : vector<4x32xi1>, vector<4x32xf32>
    %cst_76 = arith.constant 0.000000e+00 : f32
    %352 = vector.shape_cast %348 : vector<4x1xi1> to vector<4x1xi1>
    %353 = vector.broadcast %352 : vector<4x1xi1> to vector<4x32xi1>
    %354 = vector.broadcast %cst_76 : f32 to vector<4x32xf32>
    %355 = arith.select %353, %351, %354 : vector<4x32xi1>, vector<4x32xf32>
    %356 = arith.truncf %355 : vector<4x32xf32> to vector<4x32xbf16>
    %357 = arith.index_cast %c3_i32_69 : i32 to index
    %c0_77 = arith.constant 0 : index
    %c0_78 = arith.constant 0 : index
    %358 = vector.load %arg6[%357, %c0_77, %c0_78] : memref<4x4x32xbf16, #tpu.memory_space<vmem>>, vector<1x4x32xbf16>
    %359 = vector.shape_cast %358 : vector<1x4x32xbf16> to vector<4x32xbf16>
    %360 = vector.shape_cast %356 : vector<4x32xbf16> to vector<1x4x32xbf16>
    tpu.vector_store %arg6[%357, %c0_77, %c0_78], %360 {strides = array<i32>} : memref<4x4x32xbf16, #tpu.memory_space<vmem>>, vector<1x4x32xbf16>,
    %c3_i32_79 = arith.constant 3 : i32
    %361 = arith.subi %c3_i32_79, %c3_i32_69 : i32
    %362 = arith.index_cast %361 : i32 to index
    %c0_80 = arith.constant 0 : index
    %c0_81 = arith.constant 0 : index
    %363 = vector.load %arg3[%362, %c0_80, %c0_81] : memref<4x4x96xbf16, #tpu.memory_space<vmem>>, vector<1x4x96xbf16>
    %364 = vector.shape_cast %363 : vector<1x4x96xbf16> to vector<4x96xbf16>
    %365 = arith.extf %364 : vector<4x96xbf16> to vector<4x96xf32>
    %366 = arith.truncf %302 : vector<4x32xf32> to vector<4x32xbf16>
    %cst_82 = arith.constant dense<0.000000e+00> : vector<4x96xf32>
    %367 = tpu.matmul %366, %7, %cst_82 {dimension_numbers = #tpu.dot_dimension_numbers<[1], [0], [0], [1], [0, 0, 1, 1], [], []>} : vector<4x32xbf16>, vector<32x96xbf16>, vector<4x96xf32> -> vector<4x96xf32>
    %368 = vector.extract_strided_slice %365 {offsets = [0, 0], sizes = [4, 32], strides = [1, 1]} : vector<4x96xf32> to vector<4x32xf32>
    %369 = vector.extract_strided_slice %367 {offsets = [0, 0], sizes = [4, 32], strides = [1, 1]} : vector<4x96xf32> to vector<4x32xf32>
    %370 = arith.addf %368, %369 : vector<4x32xf32>
    %371 = arith.negf %370 : vector<4x32xf32>
    %372 = math.exp %371 : vector<4x32xf32>
    %cst_83 = arith.constant 1.000000e+00 : f32
    %373 = vector.broadcast %cst_83 : f32 to vector<4x32xf32>
    %374 = arith.addf %373, %372 : vector<4x32xf32>
    %375 = arith.divf %373, %374 : vector<4x32xf32>
    %376 = vector.extract_strided_slice %365 {offsets = [0, 32], sizes = [4, 32], strides = [1, 1]} : vector<4x96xf32> to vector<4x32xf32>
    %377 = vector.extract_strided_slice %367 {offsets = [0, 32], sizes = [4, 32], strides = [1, 1]} : vector<4x96xf32> to vector<4x32xf32>
    %378 = arith.addf %376, %377 : vector<4x32xf32>
    %379 = arith.negf %378 : vector<4x32xf32>
    %380 = math.exp %379 : vector<4x32xf32>
    %cst_84 = arith.constant 1.000000e+00 : f32
    %381 = vector.broadcast %cst_84 : f32 to vector<4x32xf32>
    %382 = arith.addf %381, %380 : vector<4x32xf32>
    %383 = arith.divf %381, %382 : vector<4x32xf32>
    %384 = vector.extract_strided_slice %365 {offsets = [0, 64], sizes = [4, 32], strides = [1, 1]} : vector<4x96xf32> to vector<4x32xf32>
    %385 = vector.extract_strided_slice %367 {offsets = [0, 64], sizes = [4, 32], strides = [1, 1]} : vector<4x96xf32> to vector<4x32xf32>
    %386 = vector.broadcast %10 : vector<1x32xf32> to vector<4x32xf32>
    %387 = arith.addf %385, %386 : vector<4x32xf32>
    %388 = arith.mulf %375, %387 : vector<4x32xf32>
    %389 = arith.addf %384, %388 : vector<4x32xf32>
    %390 = math.tanh %389 : vector<4x32xf32>
    %cst_85 = arith.constant 1.000000e+00 : f32
    %391 = vector.broadcast %cst_85 : f32 to vector<4x32xf32>
    %392 = arith.subf %391, %383 : vector<4x32xf32>
    %393 = arith.mulf %392, %390 : vector<4x32xf32>
    %394 = arith.mulf %383, %302 : vector<4x32xf32>
    %395 = arith.addf %393, %394 : vector<4x32xf32>
    %c7_i32_86 = arith.constant 7 : i32
    %396 = arith.subi %c7_i32_86, %312 : i32
    %397 = vector.broadcast %396 : i32 to vector<4x1xi32>
    %398 = arith.cmpi slt, %397, %11 : vector<4x1xi32>
    %399 = vector.shape_cast %398 : vector<4x1xi1> to vector<4x1xi1>
    %400 = vector.broadcast %399 : vector<4x1xi1> to vector<4x32xi1>
    %401 = arith.select %400, %395, %302 : vector<4x32xi1>, vector<4x32xf32>
    %cst_87 = arith.constant 0.000000e+00 : f32
    %402 = vector.shape_cast %398 : vector<4x1xi1> to vector<4x1xi1>
    %403 = vector.broadcast %402 : vector<4x1xi1> to vector<4x32xi1>
    %404 = vector.broadcast %cst_87 : f32 to vector<4x32xf32>
    %405 = arith.select %403, %401, %404 : vector<4x32xi1>, vector<4x32xf32>
    %406 = arith.truncf %405 : vector<4x32xf32> to vector<4x32xbf16>
    %407 = arith.index_cast %361 : i32 to index
    %c0_88 = arith.constant 0 : index
    %c0_89 = arith.constant 0 : index
    %408 = vector.load %arg7[%407, %c0_88, %c0_89] : memref<4x4x32xbf16, #tpu.memory_space<vmem>>, vector<1x4x32xbf16>
    %409 = vector.shape_cast %408 : vector<1x4x32xbf16> to vector<4x32xbf16>
    %410 = vector.shape_cast %406 : vector<4x32xbf16> to vector<1x4x32xbf16>
    tpu.vector_store %arg7[%407, %c0_88, %c0_89], %410 {strides = array<i32>} : memref<4x4x32xbf16, #tpu.memory_space<vmem>>, vector<1x4x32xbf16>,
    %c4_i32_90 = arith.constant 4 : i32
    %c0_91 = arith.constant 0 : index
    %c0_92 = arith.constant 0 : index
    %411 = vector.load %arg9[%c0_91, %c0_92] : memref<4x32xf32, #tpu.memory_space<vmem>>, vector<4x32xf32>
    tpu.vector_store %arg9[%c0_91, %c0_92], %351 {strides = array<i32>} : memref<4x32xf32, #tpu.memory_space<vmem>>, vector<4x32xf32>,
    %c0_93 = arith.constant 0 : index
    %c0_94 = arith.constant 0 : index
    %412 = vector.load %arg10[%c0_93, %c0_94] : memref<4x32xf32, #tpu.memory_space<vmem>>, vector<4x32xf32>
    tpu.vector_store %arg10[%c0_93, %c0_94], %401 {strides = array<i32>} : memref<4x32xf32, #tpu.memory_space<vmem>>, vector<4x32xf32>,
    %c0_95 = arith.constant 0 : index
    %c0_96 = arith.constant 0 : index
    %c0_97 = arith.constant 0 : index
    %413 = vector.load %arg8[%c0_95, %c0_96, %c0_97] : memref<2x4x32xf32, #tpu.memory_space<vmem>>, vector<1x4x32xf32>
    %414 = vector.shape_cast %413 : vector<1x4x32xf32> to vector<4x32xf32>
    %415 = vector.shape_cast %351 : vector<4x32xf32> to vector<1x4x32xf32>
    tpu.vector_store %arg8[%c0_95, %c0_96, %c0_97], %415 {strides = array<i32>} : memref<2x4x32xf32, #tpu.memory_space<vmem>>, vector<1x4x32xf32>,
    %c1 = arith.constant 1 : index
    %c0_98 = arith.constant 0 : index
    %c0_99 = arith.constant 0 : index
    %416 = vector.load %arg8[%c1, %c0_98, %c0_99] : memref<2x4x32xf32, #tpu.memory_space<vmem>>, vector<1x4x32xf32>
    %417 = vector.shape_cast %416 : vector<1x4x32xf32> to vector<4x32xf32>
    %418 = vector.shape_cast %401 : vector<4x32xf32> to vector<1x4x32xf32>
    tpu.vector_store %arg8[%c1, %c0_98, %c0_99], %418 {strides = array<i32>} : memref<2x4x32xf32, #tpu.memory_space<vmem>>, vector<1x4x32xf32>,
    return
  }
  func.func @transform_0(%arg0: i32) -> (i32, i32) {
    %c0_i32 = arith.constant 0 : i32
    %c0_i32_0 = arith.constant 0 : i32
    %c0_i32_1 = arith.constant 0 : i32
    return %c0_i32, %c0_i32_0 : i32, i32
  }
  func.func @transform_1(%arg0: i32) -> (i32, i32, i32) {
    %c0_i32 = arith.constant 0 : i32
    %c0_i32_0 = arith.constant 0 : i32
    %c0_i32_1 = arith.constant 0 : i32
    return %arg0, %c0_i32, %c0_i32_0 : i32, i32, i32
  }
  func.func @transform_2(%arg0: i32) -> (i32, i32, i32) {
    %c1_i32 = arith.constant 1 : i32
    %0 = arith.subi %c1_i32, %arg0 : i32
    %c0_i32 = arith.constant 0 : i32
    %c0_i32_0 = arith.constant 0 : i32
    %c0_i32_1 = arith.constant 0 : i32
    return %0, %c0_i32, %c0_i32_0 : i32, i32, i32
  }
  func.func @transform_3(%arg0: i32) -> (i32, i32, i32) {
    %c0_i32 = arith.constant 0 : i32
    %c0_i32_0 = arith.constant 0 : i32
    %c0_i32_1 = arith.constant 0 : i32
    %c0_i32_2 = arith.constant 0 : i32
    return %c0_i32, %c0_i32_0, %c0_i32_1 : i32, i32, i32
  }
  func.func @transform_4(%arg0: i32) -> (i32, i32) {
    %c0_i32 = arith.constant 0 : i32
    %c0_i32_0 = arith.constant 0 : i32
    %c0_i32_1 = arith.constant 0 : i32
    return %c0_i32, %c0_i32_0 : i32, i32
  }
  func.func @transform_5(%arg0: i32) -> (i32, i32, i32) {
    %c0_i32 = arith.constant 0 : i32
    %c0_i32_0 = arith.constant 0 : i32
    %c0_i32_1 = arith.constant 0 : i32
    return %arg0, %c0_i32, %c0_i32_0 : i32, i32, i32
  }
  func.func @transform_6(%arg0: i32) -> (i32, i32, i32) {
    %c1_i32 = arith.constant 1 : i32
    %0 = arith.subi %c1_i32, %arg0 : i32
    %c0_i32 = arith.constant 0 : i32
    %c0_i32_0 = arith.constant 0 : i32
    %c0_i32_1 = arith.constant 0 : i32
    return %0, %c0_i32, %c0_i32_0 : i32, i32, i32
  }
  func.func @transform_7(%arg0: i32) -> (i32, i32, i32) {
    %c0_i32 = arith.constant 0 : i32
    %c0_i32_0 = arith.constant 0 : i32
    %c0_i32_1 = arith.constant 0 : i32
    %c0_i32_2 = arith.constant 0 : i32
    return %c0_i32, %c0_i32_0, %c0_i32_1 : i32, i32, i32
  }
}

</mosaic_0001>

<llo_original>
// kernel: neg.1
$region0: #{neg.1}
  #allocation0 [shape = 's32[1]{0}', space=sflag, size = 0x4, scoped, tag = 'scoped memory for neg.1']
  %s0 = inlined_call_operand.vmem [shape: f32[4], index: 0, kind: input, shape index: {}]
  %s1 = inlined_call_operand.vmem [shape: f32[4], index: 1, kind: output, shape index: {}]
  %v2 = vld [vmem:[%s0] sm:$0x1]
  %3 = xla_tuple %v2
  %4 = xla_tuple %3
  %v5 = vxor.u32 %v2, 2147483648
  %6 = xla_tuple %v5
  %7 = vst [vmem:[%s1] sm:$0x1] %v5

// kernel: gru_encoder_forward.2
$region0: #{gru_encoder_forward.2}
  #allocation0 [shape = 'u32[]', space=smem, size = 0x4, offset = 0x4, fixed_abs, tag = 'smem constant byte address 0x4 - core index']
  #allocation1 [shape = 'u32[144,128]{1,0:T(1,128)}', space=vmem, size = 0x12000, scoped, tag = 'internal scratch']
  #allocation2 [shape = 'f32[4,32]{1,0:T(4,128)}', space=vmem, size = 0x800, scoped, tag = 'scratch operand']
  #allocation3 [shape = 'f32[4,32]{1,0:T(4,128)}', space=vmem, size = 0x800, scoped, tag = 'scratch operand']
  %s0 = inlined_call_operand.vmem [shape: s32[4,1], index: 0, kind: input, shape index: {}]
  %s1 = inlined_call_operand.vmem [shape: bf16[8,4,96], index: 1, kind: input, shape index: {}]
  %s2 = inlined_call_operand.vmem [shape: bf16[8,4,96], index: 2, kind: input, shape index: {}]
  %s3 = inlined_call_operand.vmem [shape: bf16[2,32,96], index: 3, kind: input, shape index: {}]
  %s4 = inlined_call_operand.vmem [shape: f32[2,32], index: 4, kind: input, shape index: {}]
  %s5 = inlined_call_operand.vmem [shape: bf16[8,4,32], index: 5, kind: output, shape index: {0}]
  %s6 = inlined_call_operand.vmem [shape: bf16[8,4,32], index: 6, kind: output, shape index: {1}]
  %s7 = inlined_call_operand.vmem [shape: f32[2,4,32], index: 7, kind: output, shape index: {2}]
  %8 = xla_tuple %s5, %s6, %s7
  %s9 = sld [smem:[#allocation0]]
  $region73: #{gru_encoder_forward.2} parent=0
    _
  %s11 = ssub.s32 1, %s9
  %s12 = scalar_select 0, %s11, %s9
  loop: start=0, step=1, limit=4
  $region2: #{gru_encoder_forward.2} parent=0 // loop_pre_header
    _
  $region3: #{gru_encoder_forward.2} parent=0 // loop_header
    %s14 = sphi 0, %s18
    %p15 = scmp.ge.s32.totalorder %s14, 4
    %s22 = sphi 0, %s22
    %s24 = sphi 0, %s22
    %s25 = sphi 0, %s24
    %s39 = sphi 0, %s25
    %s45 = sphi 0, %s47
    %s48 = sphi 0, %s45
    %s49 = sphi 0, %s48
    %s65 = sphi 0, %s49
    %s73 = sphi 0, %s75
    %s76 = sphi 0, %s73
    %s77 = sphi 0, %s76
    %s93 = sphi 0, %s77
    %s97 = sphi 0, %s97
    %s99 = sphi 0, %s97
    %s100 = sphi 0, %s99
    %s114 = sphi 0, %s100
    %s118 = sphi 0, %s118
    %s120 = sphi 0, %s118
    %s121 = sphi 0, %s120
    %s135 = sphi 0, %s121
    %s141 = sphi 0, %s143
    %s144 = sphi 0, %s141
    %s145 = sphi 0, %s144
    %s161 = sphi 0, %s145
    %s169 = sphi 0, %s171
    %s172 = sphi 0, %s169
    %s173 = sphi 0, %s172
    %s189 = sphi 0, %s173
    %s193 = sphi 0, %s193
    %s195 = sphi 0, %s193
    %s196 = sphi 0, %s195
    %s210 = sphi 0, %s196
  $region4: #{gru_encoder_forward.2} parent=0 // loop_header_branch
    %17 = sbr.rel (%p15) target = $region8
  $region5: #{gru_encoder_forward.2} parent=0 // loop_body
    %s19 = ssub.s32 %s14, 1
    %s20 = ssub.s32 %s14, 2
    %s21 = sadd.s32 %s14, 1
    %s23 = sadd.s32 %s22, 1
    %p26 = scmp.eq.s32.totalorder %s14, 1
    %p27 = scmp.ne.s32.totalorder %s22, %s24
    %p28 = scmp.eq.s32.totalorder %s14, 0
    %p29 = por %p27, %p28
    %p30 = scmp.ne.s32.totalorder %s22, %s24
    %p31 = scmp.eq.s32.totalorder %s19, 1
    %p32 = por %p30, %p31
    %p33 = scmp.ne.s32.totalorder %s24, %s25
    %p34 = scmp.eq.s32.totalorder %s19, 0
    %p35 = por %p33, %p34
    %p36 = scmp.ne.s32.totalorder %s24, %s25
    %p37 = scmp.eq.s32.totalorder %s20, 1
    %p38 = por %p36, %p37
    %p40 = scmp.ne.s32.totalorder %s25, %s39
    %p41 = scmp.eq.s32.totalorder %s20, 0
    %p42 = por %p40, %p41
    %s43 = ssub.s32 %s14, %s21
    %p44 = scmp.eq.s32.totalorder %s43, 0
    %s46 = sadd.s32 %s45, 1
    %s47 = scalar_select %p44, %s45, %s46
    %p50 = pneg %p44
    %p51 = scmp.eq.s32.totalorder %s14, 1
    %p52 = por %p50, %p51
    %p53 = scmp.ne.s32.totalorder %s45, %s48
    %p54 = scmp.eq.s32.totalorder %s14, 0
    %p55 = por %p53, %p54
    %p56 = scmp.ne.s32.totalorder %s45, %s48
    %p57 = scmp.eq.s32.totalorder %s19, 1
    %p58 = por %p56, %p57
    %p59 = scmp.ne.s32.totalorder %s48, %s49
    %p60 = scmp.eq.s32.totalorder %s19, 0
    %p61 = por %p59, %p60
    %p62 = scmp.ne.s32.totalorder %s48, %s49
    %p63 = scmp.eq.s32.totalorder %s20, 1
    %p64 = por %p62, %p63
    %p66 = scmp.ne.s32.totalorder %s49, %s65
    %p67 = scmp.eq.s32.totalorder %s20, 0
    %p68 = por %p66, %p67
    %s69 = ssub.s32 1, %s14
    %s70 = ssub.s32 1, %s21
    %s71 = ssub.s32 %s69, %s70
    %p72 = scmp.eq.s32.totalorder %s71, 0
    %s74 = sadd.s32 %s73, 1
    %s75 = scalar_select %p72, %s73, %s74
    %p78 = pneg %p72
    %p79 = scmp.eq.s32.totalorder %s14, 1
    %p80 = por %p78, %p79
    %p81 = scmp.ne.s32.totalorder %s73, %s76
    %p82 = scmp.eq.s32.totalorder %s14, 0
    %p83 = por %p81, %p82
    %p84 = scmp.ne.s32.totalorder %s73, %s76
    %p85 = scmp.eq.s32.totalorder %s19, 1
    %p86 = por %p84, %p85
    %p87 = scmp.ne.s32.totalorder %s76, %s77
    %p88 = scmp.eq.s32.totalorder %s19, 0
    %p89 = por %p87, %p88
    %p90 = scmp.ne.s32.totalorder %s76, %s77
    %p91 = scmp.eq.s32.totalorder %s20, 1
    %p92 = por %p90, %p91
    %p94 = scmp.ne.s32.totalorder %s77, %s93
    %p95 = scmp.eq.s32.totalorder %s20, 0
    %p96 = por %p94, %p95
    %s98 = sadd.s32 %s97, 1
    %p101 = scmp.eq.s32.totalorder %s14, 1
    %p102 = scmp.ne.s32.totalorder %s97, %s99
    %p103 = scmp.eq.s32.totalorder %s14, 0
    %p104 = por %p102, %p103
    %p105 = scmp.ne.s32.totalorder %s97, %s99
    %p106 = scmp.eq.s32.totalorder %s19, 1
    %p107 = por %p105, %p106
    %p108 = scmp.ne.s32.totalorder %s99, %s100
    %p109 = scmp.eq.s32.totalorder %s19, 0
    %p110 = por %p108, %p109
    %p111 = scmp.ne.s32.totalorder %s99, %s100
    %p112 = scmp.eq.s32.totalorder %s20, 1
    %p113 = por %p111, %p112
    %p115 = scmp.ne.s32.totalorder %s100, %s114
    %p116 = scmp.eq.s32.totalorder %s20, 0
    %p117 = por %p115, %p116
    %s119 = sadd.s32 %s118, 1
    %p122 = scmp.eq.s32.totalorder %s14, 1
    %p123 = scmp.ne.s32.totalorder %s118, %s120
    %p124 = scmp.eq.s32.totalorder %s14, 0
    %p125 = por %p123, %p124
    %p126 = scmp.ne.s32.totalorder %s118, %s120
    %p127 = scmp.eq.s32.totalorder %s19, 1
    %p128 = por %p126, %p127
    %p129 = scmp.ne.s32.totalorder %s120, %s121
    %p130 = scmp.eq.s32.totalorder %s19, 0
    %p131 = por %p129, %p130
    %p132 = scmp.ne.s32.totalorder %s120, %s121
    %p133 = scmp.eq.s32.totalorder %s20, 1
    %p134 = por %p132, %p133
    %p136 = scmp.ne.s32.totalorder %s121, %s135
    %p137 = scmp.eq.s32.totalorder %s20, 0
    %p138 = por %p136, %p137
    %s139 = ssub.s32 %s14, %s21
    %p140 = scmp.eq.s32.totalorder %s139, 0
    %s142 = sadd.s32 %s141, 1
    %s143 = scalar_select %p140, %s141, %s142
    %p146 = pneg %p140
    %p147 = scmp.eq.s32.totalorder %s14, 1
    %p148 = por %p146, %p147
    %p149 = scmp.ne.s32.totalorder %s141, %s144
    %p150 = scmp.eq.s32.totalorder %s14, 0
    %p151 = por %p149, %p150
    %p152 = scmp.ne.s32.totalorder %s141, %s144
    %p153 = scmp.eq.s32.totalorder %s19, 1
    %p154 = por %p152, %p153
    %p155 = scmp.ne.s32.totalorder %s144, %s145
    %p156 = scmp.eq.s32.totalorder %s19, 0
    %p157 = por %p155, %p156
    %p158 = scmp.ne.s32.totalorder %s144, %s145
    %p159 = scmp.eq.s32.totalorder %s20, 1
    %p160 = por %p158, %p159
    %p162 = scmp.ne.s32.totalorder %s145, %s161
    %p163 = scmp.eq.s32.totalorder %s20, 0
    %p164 = por %p162, %p163
    %s165 = ssub.s32 1, %s14
    %s166 = ssub.s32 1, %s21
    %s167 = ssub.s32 %s165, %s166
    %p168 = scmp.eq.s32.totalorder %s167, 0
    %s170 = sadd.s32 %s169, 1
    %s171 = scalar_select %p168, %s169, %s170
    %p174 = pneg %p168
    %p175 = scmp.eq.s32.totalorder %s14, 1
    %p176 = por %p174, %p175
    %p177 = scmp.ne.s32.totalorder %s169, %s172
    %p178 = scmp.eq.s32.totalorder %s14, 0
    %p179 = por %p177, %p178
    %p180 = scmp.ne.s32.totalorder %s169, %s172
    %p181 = scmp.eq.s32.totalorder %s19, 1
    %p182 = por %p180, %p181
    %p183 = scmp.ne.s32.totalorder %s172, %s173
    %p184 = scmp.eq.s32.totalorder %s19, 0
    %p185 = por %p183, %p184
    %p186 = scmp.ne.s32.totalorder %s172, %s173
    %p187 = scmp.eq.s32.totalorder %s20, 1
    %p188 = por %p186, %p187
    %p190 = scmp.ne.s32.totalorder %s173, %s189
    %p191 = scmp.eq.s32.totalorder %s20, 0
    %p192 = por %p190, %p191
    %s194 = sadd.s32 %s193, 1
    %p197 = scmp.eq.s32.totalorder %s14, 1
    %p198 = scmp.ne.s32.totalorder %s193, %s195
    %p199 = scmp.eq.s32.totalorder %s14, 0
    %p200 = por %p198, %p199
    %p201 = scmp.ne.s32.totalorder %s193, %s195
    %p202 = scmp.eq.s32.totalorder %s19, 1
    %p203 = por %p201, %p202
    %p204 = scmp.ne.s32.totalorder %s195, %s196
    %p205 = scmp.eq.s32.totalorder %s19, 0
    %p206 = por %p204, %p205
    %p207 = scmp.ne.s32.totalorder %s195, %s196
    %p208 = scmp.eq.s32.totalorder %s20, 1
    %p209 = por %p207, %p208
    %p211 = scmp.ne.s32.totalorder %s196, %s210
    %p212 = scmp.eq.s32.totalorder %s20, 0
    %p213 = por %p211, %p212
    %p214 = scmp.le.s32.totalorder 1, %s14
    %p215 = scmp.lt.s32.totalorder %s14, 3
    %p216 = pnand %p214, %p215
    %p217 = pneg %p216
    // Predicated region
    $region9: #{gru_encoder_forward.2} parent=5 // pred_check
      _
    $region10: #{gru_encoder_forward.2} parent=5 // pred_check_branch
      %219 = sbr.rel (%p216) target = $region12
    $region11: #{gru_encoder_forward.2} parent=5 // pred_region
      %s220 = ssub.s32 %s14, 1
      // Predicated region
      $region13: #{gru_encoder_forward.2} parent=11 // pred_check
        %p221 = pneg %p35
      $region14: #{gru_encoder_forward.2} parent=11 // pred_check_branch
        %223 = sbr.rel (%p221) target = $region16
      $region15: #{gru_encoder_forward.2} parent=11 // pred_region
        _
      $region16: #{gru_encoder_forward.2} parent=11 // pred_fallthru
        _
      // Predicated region
      $region17: #{gru_encoder_forward.2} parent=11 // pred_check
        %p224 = pneg %p110
      $region18: #{gru_encoder_forward.2} parent=11 // pred_check_branch
        %226 = sbr.rel (%p224) target = $region20
      $region19: #{gru_encoder_forward.2} parent=11 // pred_region
        _
      $region20: #{gru_encoder_forward.2} parent=11 // pred_fallthru
        _
      // Predicated region
      $region21: #{gru_encoder_forward.2} parent=11 // pred_check
        %p227 = pneg %p131
      $region22: #{gru_encoder_forward.2} parent=11 // pred_check_branch
        %229 = sbr.rel (%p227) target = $region24
      $region23: #{gru_encoder_forward.2} parent=11 // pred_region
        _
      $region24: #{gru_encoder_forward.2} parent=11 // pred_fallthru
        _
    $region12: #{gru_encoder_forward.2} parent=5 // pred_fallthru
      _
    %p230 = scmp.lt.s32.totalorder %s14, 2
    // Predicated region
    $region25: #{gru_encoder_forward.2} parent=5 // pred_check
      %p231 = pneg %p230
    $region26: #{gru_encoder_forward.2} parent=5 // pred_check_branch
      %233 = sbr.rel (%p231) target = $region28
    $region27: #{gru_encoder_forward.2} parent=5 // pred_region
      // Predicated region
      $region29: #{gru_encoder_forward.2} parent=27 // pred_check
        %p234 = pneg %p55
      $region30: #{gru_encoder_forward.2} parent=27 // pred_check_branch
        %236 = sbr.rel (%p234) target = $region32
      $region31: #{gru_encoder_forward.2} parent=27 // pred_region
        %s237 = smul.u32 4, %s14
        %p238 = scmp.lt.s32.totalorder %s237, 7
        %s239 = scalar_select %p238, %s237, 7
        %s240 = smul.addr %s239, 2
        %s241 = scalar_lea.vmem %s1, %s240
        %s242 = smul.u32 4, %s14
      $region32: #{gru_encoder_forward.2} parent=27 // pred_fallthru
        _
      // Predicated region
      $region33: #{gru_encoder_forward.2} parent=27 // pred_check
        %p243 = pneg %p83
      $region34: #{gru_encoder_forward.2} parent=27 // pred_check_branch
        %245 = sbr.rel (%p243) target = $region36
      $region35: #{gru_encoder_forward.2} parent=27 // pred_region
        %s246 = ssub.s32 1, %s14
        %s247 = smul.u32 4, %s246
        %p248 = scmp.lt.s32.totalorder %s247, 7
        %s249 = scalar_select %p248, %s247, 7
        %s250 = smul.addr %s249, 2
        %s251 = scalar_lea.vmem %s2, %s250
        %s252 = ssub.s32 1, %s14
        %s253 = smul.u32 4, %s252
      $region36: #{gru_encoder_forward.2} parent=27 // pred_fallthru
        _
    $region28: #{gru_encoder_forward.2} parent=5 // pred_fallthru
      _
    %p254 = scmp.le.s32.totalorder 1, %s14
    %p255 = scmp.lt.s32.totalorder %s14, 3
    %p256 = pnand %p254, %p255
    %p257 = pneg %p256
    // Predicated region
    $region37: #{gru_encoder_forward.2} parent=5 // pred_check
      _
    $region38: #{gru_encoder_forward.2} parent=5 // pred_check_branch
      %259 = sbr.rel (%p256) target = $region40
    $region39: #{gru_encoder_forward.2} parent=5 // pred_region
      %s260 = ssub.s32 %s14, 1
      %p261 = pneg %p35
      %p262 = pneg %p32
      %s263 = smul.u32 4, %s19
      %p264 = scmp.lt.s32.totalorder %s263, 7
      %s265 = scalar_select %p264, %s263, 7
      %s266 = smul.addr %s265, 2
      %s267 = scalar_lea.vmem %s1, %s266
      %p268 = pneg %p61
      %p269 = pneg %p58
      %s270 = ssub.s32 1, %s19
      %s271 = smul.u32 4, %s270
      %p272 = scmp.lt.s32.totalorder %s271, 7
      %s273 = scalar_select %p272, %s271, 7
      %s274 = smul.addr %s273, 2
      %s275 = scalar_lea.vmem %s2, %s274
      %p276 = pneg %p89
      %p277 = pneg %p86
      %p278 = pneg %p110
      %p279 = pneg %p107
      %p280 = pneg %p131
      %p281 = pneg %p128
      %p282 = pneg %p157
      %p283 = pneg %p154
      %s284 = smul.u32 4, %s19
      %p285 = scmp.lt.s32.totalorder %s284, 7
      %s286 = scalar_select %p285, %s284, 7
      %s287 = smul.addr %s286, 2
      %s288 = scalar_lea.vmem %s5, %s287
      %p289 = pneg %p185
      %p290 = pneg %p182
      %s291 = ssub.s32 1, %s19
      %s292 = smul.u32 4, %s291
      %p293 = scmp.lt.s32.totalorder %s292, 7
      %s294 = scalar_select %p293, %s292, 7
      %s295 = smul.addr %s294, 2
      %s296 = scalar_lea.vmem %s6, %s295
      %p297 = pneg %p206
      %p298 = pneg %p203
      %s299 = smul.u32 4, %s19
      %p300 = scmp.lt.s32.totalorder %s299, 7
      %s301 = scalar_select %p300, %s299, 7
      %s302 = smul.addr %s301, 2
      %s303 = scalar_lea.vmem %s1, %s302
      %s304 = smul.u32 4, %s19
      %s305 = ssub.s32 1, %s19
      %s306 = smul.u32 4, %s305
      %p307 = scmp.lt.s32.totalorder %s306, 7
      %s308 = scalar_select %p307, %s306, 7
      %s309 = smul.addr %s308, 2
      %s310 = scalar_lea.vmem %s2, %s309
      %s311 = ssub.s32 1, %s19
      %s312 = smul.u32 4, %s311
      %s313 = smul.u32 4, %s19
      %p314 = scmp.lt.s32.totalorder %s313, 7
      %s315 = scalar_select %p314, %s313, 7
      %s316 = smul.addr %s315, 2
      %s317 = scalar_lea.vmem %s5, %s316
      %s318 = smul.u32 4, %s19
      %s319 = ssub.s32 1, %s19
      %s320 = smul.u32 4, %s319
      %p321 = scmp.lt.s32.totalorder %s320, 7
      %s322 = scalar_select %p321, %s320, 7
      %s323 = smul.addr %s322, 2
      %s324 = scalar_lea.vmem %s6, %s323
      %s325 = ssub.s32 1, %s19
      %s326 = smul.u32 4, %s325
      %p328 = scmp.eq.s32.totalorder %s19, 0
      // Predicated region
      $region41: #{gru_encoder_forward.2} parent=39 // pred_check
        %p329 = pneg %p328
      $region42: #{gru_encoder_forward.2} parent=39 // pred_check_branch
        %331 = sbr.rel (%p329) target = $region44
      $region43: #{gru_encoder_forward.2} parent=39 // pred_region
        %vm332 = vcmask 257024
        %333 = vst.msk [vmem:[#allocation2] sm:$0xf] %vm332, 0.0
        %334 = vst.msk [vmem:[#allocation3] sm:$0xf] %vm332, 0.0
      $region44: #{gru_encoder_forward.2} parent=39 // pred_fallthru
        _
      %v335 = vld [vmem:[%s3] sm:$0xf]
      %v336 = vld [vmem:[%s3 + $0x4] sm:$0xf]
      %v337 = vld [vmem:[%s3 + $0x8] sm:$0xf]
      %v338 = vld [vmem:[%s3 + $0xc] sm:$0xf]
      %v339 = vld [vmem:[%s3 + $0x10] sm:$0xf]
      %v340 = vld [vmem:[%s3 + $0x14] sm:$0xf]
      %v341 = vld [vmem:[%s3 + $0x18] sm:$0xf]
      %v342 = vld [vmem:[%s3 + $0x1c] sm:$0xf]
      %v343 = vld [vmem:[%s4] sm:$0x3]
      %v344 = vld [vmem:[%s0] sm:$0xf]
      %s345 = smul.u32 %s19, 4
      %v346 = vld [vmem:[#allocation2] sm:$0xf]
      %v347 = vld [vmem:[#allocation3] sm:$0xf]
      %v348 = vld [vmem:[%s303] sm:$0x3]
      %v349 = vunpack.c.l.bf16 %v348
      %v350 = vpack.c.bf16 %v346, %v346
      %v355 = vunpack.c.l.b16 %v335
      %v356 = vunpack.c.l.b16 %v336
      %v357 = vunpack.c.l.b16 %v337
      %v358 = vunpack.c.l.b16 %v338
      %v359 = vpack.c.b16 %v356, %v355
      %v360 = vpack.c.b16 %v358, %v357
      %vm363 = vcmask 261120
      %v365 = vsel %vm363, %v350, 0
      %367 = vmatprep.subr.bf16.mxu0 0
      %368 = vmatpush1.bf16.msra.mxu0 %v359
      %369 = vmatprep.subr.bf16.mxu0 0
      %370 = vmatpush1.bf16.msra.mxu0 %v360
      %371 = vmatprep.subr.bf16.mxu0 0
      %372 = vmatpush1.bf16.msra.mxu0 0
      %373 = vmatprep.subr.bf16.mxu0 0
      %374 = vmatpush1.bf16.msra.mxu0 0
      %375 = vmatprep.subr.bf16.mxu0 0
      %376 = vmatpush1.bf16.msra.mxu0 0
      %377 = vmatprep.subr.bf16.mxu0 0
      %378 = vmatpush1.bf16.msra.mxu0 0
      %379 = vmatprep.subr.bf16.mxu0 0
      %380 = vmatpush1.bf16.msra.mxu0 0
      %381 = vmatprep.subr.bf16.mxu0 0
      %382 = vmatpush1.bf16.msra.mxu0 0
      %383 = vmatprep.subr.bf16.mxu0 0
      %384 = vmatpush1.bf16.msra.mxu0 0
      %385 = vmatprep.subr.bf16.mxu0 0
      %386 = vmatpush1.bf16.msra.mxu0 0
      %387 = vmatprep.subr.bf16.mxu0 0
      %388 = vmatpush1.bf16.msra.mxu0 0
      %389 = vmatprep.subr.bf16.mxu0 0
      %390 = vmatpush1.bf16.msra.mxu0 0
      %391 = vmatprep.subr.bf16.mxu0 0
      %392 = vmatpush1.bf16.msra.mxu0 0
      %393 = vmatprep.subr.bf16.mxu0 0
      %394 = vmatpush1.bf16.msra.mxu0 0
      %395 = vmatprep.subr.bf16.mxu0 0
      %396 = vmatpush1.bf16.msra.mxu0 0
      %397 = vmatprep.subr.bf16.mxu0 0
      %398 = vmatpush1.bf16.msra.mxu0 0
      %399 = vmatprep.mubr.bf16.mxu0 0
      %400 = vmatmul.mubr.bf16.gmra.mrb[0].mxu0 %v365
      %v401 = vpop.f32.mrb[0].mxu0
      %v402 = vadd.f32 0.0, %v401
      %v403 = vpop.f32.mrb[0].mxu0
      %v404 = vpop.f32.mrb[0].mxu0
      %v405 = vpop.f32.mrb[0].mxu0
      %406 = vdwg.mxu0
      %v407 = vadd.f32 %v349, %v402
      %v408 = vxor.u32 %v407, 2147483648
      %v409 = vmul.f32 %v408, 1.442695
      %v410 = vpow.pop %v409
      %v411 = vadd.f32 %v410, 1.0
      %v412 = vrcp.pop %v411
      %v413 = vmul.f32 1.0, %v412
      %v414 = vlaneseq
      %v415 = vshrl.u32 %v414, 7
      %v416 = vsub.s32 0, %v415
      %v417 = vrot.slane %v343, %v416
      %419 = vrot.lane.b32.xlu0 %v417, 64
      %v420 = vpop.permute.xlu0 %419
      %v422 = vadd.f32 %v402, %v420
      %424 = vrot.lane.b32.xlu0 %v422, 64
      %v425 = vpop.permute.xlu0 %424
      %v427 = vmul.f32 %v413, %v425
      %429 = vrot.lane.b32.xlu0 %v427, 64
      %v430 = vpop.permute.xlu0 %429
      %v432 = vadd.f32 %v349, %v430
      %v433 = vtanh.pop %v432
      %v434 = vsub.f32 1.0, %v413
      %436 = vrot.lane.b32.xlu0 %v433, 96
      %v437 = vpop.permute.xlu0 %436
      %v439 = vmul.f32 %v434, %v437
      %441 = vrot.lane.b32.xlu0 %v346, 32
      %v442 = vpop.permute.xlu0 %441
      %v444 = vmul.f32 %v413, %v442
      %v445 = vadd.f32 %v439, %v444
      %v446 = vstv %s345
      %vm447 = vcmp.lt.s32.totalorder %v446, %v344
      %v448 = vsel %vm447, 1, 0
      %449 = vset.pattern.permute.xlu0 0
      %450 = vperm.xlu0 %449, %v448
      %v451 = vpop.permute.xlu0 %450
      %vm452 = vcmp.eq.s32.totalorder %v451, 1
      %454 = vrot.lane.b32.xlu0 %v445, 96
      %v455 = vpop.permute.xlu0 %454
      %v457 = vsel %vm452, %v455, %v346
      %v458 = vsel %vm452, %v455, 0.0
      %v459 = vpack.c.bf16 %v458, %v458
      %vm460 = vcmask 254976
      %461 = vst.msk [vmem:[%s317] sm:$0x3] %vm460, %v459
      %s462 = scalar_lea.vmem %s310, 6
      %v463 = vld [vmem:[%s462] sm:$0x3]
      %v464 = vunpack.c.l.bf16 %v463
      %v465 = vpack.c.bf16 %v347, %v347
      %v470 = vunpack.c.l.b16 %v339
      %v471 = vunpack.c.l.b16 %v340
      %v472 = vunpack.c.l.b16 %v341
      %v473 = vunpack.c.l.b16 %v342
      %v474 = vpack.c.b16 %v471, %v470
      %v475 = vpack.c.b16 %v473, %v472
      %v479 = vsel %vm363, %v465, 0
      %481 = vmatprep.subr.bf16.mxu0 0
      %482 = vmatpush1.bf16.msra.mxu0 %v474
      %483 = vmatprep.subr.bf16.mxu0 0
      %484 = vmatpush1.bf16.msra.mxu0 %v475
      %485 = vmatprep.subr.bf16.mxu0 0
      %486 = vmatpush1.bf16.msra.mxu0 0
      %487 = vmatprep.subr.bf16.mxu0 0
      %488 = vmatpush1.bf16.msra.mxu0 0
      %489 = vmatprep.subr.bf16.mxu0 0
      %490 = vmatpush1.bf16.msra.mxu0 0
      %491 = vmatprep.subr.bf16.mxu0 0
      %492 = vmatpush1.bf16.msra.mxu0 0
      %493 = vmatprep.subr.bf16.mxu0 0
      %494 = vmatpush1.bf16.msra.mxu0 0
      %495 = vmatprep.subr.bf16.mxu0 0
      %496 = vmatpush1.bf16.msra.mxu0 0
      %497 = vmatprep.subr.bf16.mxu0 0
      %498 = vmatpush1.bf16.msra.mxu0 0
      %499 = vmatprep.subr.bf16.mxu0 0
      %500 = vmatpush1.bf16.msra.mxu0 0
      %501 = vmatprep.subr.bf16.mxu0 0
      %502 = vmatpush1.bf16.msra.mxu0 0
      %503 = vmatprep.subr.bf16.mxu0 0
      %504 = vmatpush1.bf16.msra.mxu0 0
      %505 = vmatprep.subr.bf16.mxu0 0
      %506 = vmatpush1.bf16.msra.mxu0 0
      %507 = vmatprep.subr.bf16.mxu0 0
      %508 = vmatpush1.bf16.msra.mxu0 0
      %509 = vmatprep.subr.bf16.mxu0 0
      %510 = vmatpush1.bf16.msra.mxu0 0
      %511 = vmatprep.subr.bf16.mxu0 0
      %512 = vmatpush1.bf16.msra.mxu0 0
      %513 = vmatprep.mubr.bf16.mxu0 0
      %514 = vmatmul.mubr.bf16.gmra.mrb[0].mxu0 %v479
      %v515 = vpop.f32.mrb[0].mxu0
      %v516 = vadd.f32 0.0, %v515
      %v517 = vpop.f32.mrb[0].mxu0
      %v518 = vpop.f32.mrb[0].mxu0
      %v519 = vpop.f32.mrb[0].mxu0
      %520 = vdwg.mxu0
      %v521 = vadd.f32 %v464, %v516
      %v522 = vxor.u32 %v521, 2147483648
      %v523 = vmul.f32 %v522, 1.442695
      %v524 = vpow.pop %v523
      %v525 = vadd.f32 %v524, 1.0
      %v526 = vrcp.pop %v525
      %v527 = vmul.f32 1.0, %v526
      %v528 = vlaneseq
      %v529 = vshrl.u32 %v528, 7
      %v530 = vsub.s32 1, %v529
      %v531 = vrot.slane %v343, %v530
      %533 = vrot.lane.b32.xlu0 %v531, 64
      %v534 = vpop.permute.xlu0 %533
      %v536 = vadd.f32 %v516, %v534
      %538 = vrot.lane.b32.xlu0 %v536, 64
      %v539 = vpop.permute.xlu0 %538
      %v541 = vmul.f32 %v527, %v539
      %543 = vrot.lane.b32.xlu0 %v541, 64
      %v544 = vpop.permute.xlu0 %543
      %v546 = vadd.f32 %v464, %v544
      %v547 = vtanh.pop %v546
      %v548 = vsub.f32 1.0, %v527
      %550 = vrot.lane.b32.xlu0 %v547, 96
      %v551 = vpop.permute.xlu0 %550
      %v553 = vmul.f32 %v548, %v551
      %555 = vrot.lane.b32.xlu0 %v347, 32
      %v556 = vpop.permute.xlu0 %555
      %v558 = vmul.f32 %v527, %v556
      %v559 = vadd.f32 %v553, %v558
      %s560 = ssub.s32 7, %s345
      %v561 = vstv %s560
      %vm562 = vcmp.lt.s32.totalorder %v561, %v344
      %v563 = vsel %vm562, 1, 0
      %564 = vset.pattern.permute.xlu0 0
      %565 = vperm.xlu0 %564, %v563
      %v566 = vpop.permute.xlu0 %565
      %vm567 = vcmp.eq.s32.totalorder %v566, 1
      %569 = vrot.lane.b32.xlu0 %v559, 96
      %v570 = vpop.permute.xlu0 %569
      %v572 = vsel %vm567, %v570, %v347
      %v573 = vsel %vm567, %v570, 0.0
      %v574 = vpack.c.bf16 %v573, %v573
      %s575 = scalar_lea.vmem %s324, 6
      %576 = vst.msk [vmem:[%s575] sm:$0x3] %vm460, %v574
      %s577 = sadd.s32 %s345, 1
      %s578 = scalar_lea.vmem %s303, 2
      %v579 = vld [vmem:[%s578] sm:$0x3]
      %v580 = vunpack.c.l.bf16 %v579
      %v581 = vpack.c.bf16 %v457, %v457
      %v583 = vsel %vm363, %v581, 0
      %585 = vmatprep.subr.bf16.mxu0 0
      %586 = vmatpush1.bf16.msra.mxu0 %v359
      %587 = vmatprep.subr.bf16.mxu0 0
      %588 = vmatpush1.bf16.msra.mxu0 %v360
      %589 = vmatprep.subr.bf16.mxu0 0
      %590 = vmatpush1.bf16.msra.mxu0 0
      %591 = vmatprep.subr.bf16.mxu0 0
      %592 = vmatpush1.bf16.msra.mxu0 0
      %593 = vmatprep.subr.bf16.mxu0 0
      %594 = vmatpush1.bf16.msra.mxu0 0
      %595 = vmatprep.subr.bf16.mxu0 0
      %596 = vmatpush1.bf16.msra.mxu0 0
      %597 = vmatprep.subr.bf16.mxu0 0
      %598 = vmatpush1.bf16.msra.mxu0 0
      %599 = vmatprep.subr.bf16.mxu0 0
      %600 = vmatpush1.bf16.msra.mxu0 0
      %601 = vmatprep.subr.bf16.mxu0 0
      %602 = vmatpush1.bf16.msra.mxu0 0
      %603 = vmatprep.subr.bf16.mxu0 0
      %604 = vmatpush1.bf16.msra.mxu0 0
      %605 = vmatprep.subr.bf16.mxu0 0
      %606 = vmatpush1.bf16.msra.mxu0 0
      %607 = vmatprep.subr.bf16.mxu0 0
      %608 = vmatpush1.bf16.msra.mxu0 0
      %609 = vmatprep.subr.bf16.mxu0 0
      %610 = vmatpush1.bf16.msra.mxu0 0
      %611 = vmatprep.subr.bf16.mxu0 0
      %612 = vmatpush1.bf16.msra.mxu0 0
      %613 = vmatprep.subr.bf16.mxu0 0
      %614 = vmatpush1.bf16.msra.mxu0 0
      %615 = vmatprep.subr.bf16.mxu0 0
      %616 = vmatpush1.bf16.msra.mxu0 0
      %617 = vmatprep.mubr.bf16.mxu0 0
      %618 = vmatmul.mubr.bf16.gmra.mrb[0].mxu0 %v583
      %v619 = vpop.f32.mrb[0].mxu0
      %v620 = vadd.f32 0.0, %v619
      %v621 = vpop.f32.mrb[0].mxu0
      %v622 = vpop.f32.mrb[0].mxu0
      %v623 = vpop.f32.mrb[0].mxu0
      %624 = vdwg.mxu0
      %v625 = vadd.f32 %v580, %v620
      %v626 = vxor.u32 %v625, 2147483648
      %v627 = vmul.f32 %v626, 1.442695
      %v628 = vpow.pop %v627
      %v629 = vadd.f32 %v628, 1.0
      %v630 = vrcp.pop %v629
      %v631 = vmul.f32 1.0, %v630
      %v632 = vadd.f32 %v620, %v420
      %634 = vrot.lane.b32.xlu0 %v632, 64
      %v635 = vpop.permute.xlu0 %634
      %v637 = vmul.f32 %v631, %v635
      %639 = vrot.lane.b32.xlu0 %v637, 64
      %v640 = vpop.permute.xlu0 %639
      %v642 = vadd.f32 %v580, %v640
      %v643 = vtanh.pop %v642
      %v644 = vsub.f32 1.0, %v631
      %646 = vrot.lane.b32.xlu0 %v643, 96
      %v647 = vpop.permute.xlu0 %646
      %v649 = vmul.f32 %v644, %v647
      %651 = vrot.lane.b32.xlu0 %v457, 32
      %v652 = vpop.permute.xlu0 %651
      %v654 = vmul.f32 %v631, %v652
      %v655 = vadd.f32 %v649, %v654
      %v656 = vstv %s577
      %vm657 = vcmp.lt.s32.totalorder %v656, %v344
      %v658 = vsel %vm657, 1, 0
      %659 = vset.pattern.permute.xlu0 0
      %660 = vperm.xlu0 %659, %v658
      %v661 = vpop.permute.xlu0 %660
      %vm662 = vcmp.eq.s32.totalorder %v661, 1
      %664 = vrot.lane.b32.xlu0 %v655, 96
      %v665 = vpop.permute.xlu0 %664
      %v667 = vsel %vm662, %v665, %v457
      %v668 = vsel %vm662, %v665, 0.0
      %v669 = vpack.c.bf16 %v668, %v668
      %s670 = scalar_lea.vmem %s317, 2
      %671 = vst.msk [vmem:[%s670] sm:$0x3] %vm460, %v669
      %s672 = scalar_lea.vmem %s310, 4
      %v673 = vld [vmem:[%s672] sm:$0x3]
      %v674 = vunpack.c.l.bf16 %v673
      %v675 = vpack.c.bf16 %v572, %v572
      %v677 = vsel %vm363, %v675, 0
      %679 = vmatprep.subr.bf16.mxu0 0
      %680 = vmatpush1.bf16.msra.mxu0 %v474
      %681 = vmatprep.subr.bf16.mxu0 0
      %682 = vmatpush1.bf16.msra.mxu0 %v475
      %683 = vmatprep.subr.bf16.mxu0 0
      %684 = vmatpush1.bf16.msra.mxu0 0
      %685 = vmatprep.subr.bf16.mxu0 0
      %686 = vmatpush1.bf16.msra.mxu0 0
      %687 = vmatprep.subr.bf16.mxu0 0
      %688 = vmatpush1.bf16.msra.mxu0 0
      %689 = vmatprep.subr.bf16.mxu0 0
      %690 = vmatpush1.bf16.msra.mxu0 0
      %691 = vmatprep.subr.bf16.mxu0 0
      %692 = vmatpush1.bf16.msra.mxu0 0
      %693 = vmatprep.subr.bf16.mxu0 0
      %694 = vmatpush1.bf16.msra.mxu0 0
      %695 = vmatprep.subr.bf16.mxu0 0
      %696 = vmatpush1.bf16.msra.mxu0 0
      %697 = vmatprep.subr.bf16.mxu0 0
      %698 = vmatpush1.bf16.msra.mxu0 0
      %699 = vmatprep.subr.bf16.mxu0 0
      %700 = vmatpush1.bf16.msra.mxu0 0
      %701 = vmatprep.subr.bf16.mxu0 0
      %702 = vmatpush1.bf16.msra.mxu0 0
      %703 = vmatprep.subr.bf16.mxu0 0
      %704 = vmatpush1.bf16.msra.mxu0 0
      %705 = vmatprep.subr.bf16.mxu0 0
      %706 = vmatpush1.bf16.msra.mxu0 0
      %707 = vmatprep.subr.bf16.mxu0 0
      %708 = vmatpush1.bf16.msra.mxu0 0
      %709 = vmatprep.subr.bf16.mxu0 0
      %710 = vmatpush1.bf16.msra.mxu0 0
      %711 = vmatprep.mubr.bf16.mxu0 0
      %712 = vmatmul.mubr.bf16.gmra.mrb[0].mxu0 %v677
      %v713 = vpop.f32.mrb[0].mxu0
      %v714 = vadd.f32 0.0, %v713
      %v715 = vpop.f32.mrb[0].mxu0
      %v716 = vpop.f32.mrb[0].mxu0
      %v717 = vpop.f32.mrb[0].mxu0
      %718 = vdwg.mxu0
      %v719 = vadd.f32 %v674, %v714
      %v720 = vxor.u32 %v719, 2147483648
      %v721 = vmul.f32 %v720, 1.442695
      %v722 = vpow.pop %v721
      %v723 = vadd.f32 %v722, 1.0
      %v724 = vrcp.pop %v723
      %v725 = vmul.f32 1.0, %v724
      %v726 = vadd.f32 %v714, %v534
      %728 = vrot.lane.b32.xlu0 %v726, 64
      %v729 = vpop.permute.xlu0 %728
      %v731 = vmul.f32 %v725, %v729
      %733 = vrot.lane.b32.xlu0 %v731, 64
      %v734 = vpop.permute.xlu0 %733
      %v736 = vadd.f32 %v674, %v734
      %v737 = vtanh.pop %v736
      %v738 = vsub.f32 1.0, %v725
      %740 = vrot.lane.b32.xlu0 %v737, 96
      %v741 = vpop.permute.xlu0 %740
      %v743 = vmul.f32 %v738, %v741
      %745 = vrot.lane.b32.xlu0 %v572, 32
      %v746 = vpop.permute.xlu0 %745
      %v748 = vmul.f32 %v725, %v746
      %v749 = vadd.f32 %v743, %v748
      %s750 = ssub.s32 6, %s345
      %v751 = vstv %s750
      %vm752 = vcmp.lt.s32.totalorder %v751, %v344
      %v753 = vsel %vm752, 1, 0
      %754 = vset.pattern.permute.xlu0 0
      %755 = vperm.xlu0 %754, %v753
      %v756 = vpop.permute.xlu0 %755
      %vm757 = vcmp.eq.s32.totalorder %v756, 1
      %759 = vrot.lane.b32.xlu0 %v749, 96
      %v760 = vpop.permute.xlu0 %759
      %v762 = vsel %vm757, %v760, %v572
      %v763 = vsel %vm757, %v760, 0.0
      %v764 = vpack.c.bf16 %v763, %v763
      %s765 = scalar_lea.vmem %s324, 4
      %766 = vst.msk [vmem:[%s765] sm:$0x3] %vm460, %v764
      %s767 = sadd.s32 %s345, 2
      %s768 = scalar_lea.vmem %s303, 4
      %v769 = vld [vmem:[%s768] sm:$0x3]
      %v770 = vunpack.c.l.bf16 %v769
      %v771 = vpack.c.bf16 %v667, %v667
      %v773 = vsel %vm363, %v771, 0
      %775 = vmatprep.subr.bf16.mxu0 0
      %776 = vmatpush1.bf16.msra.mxu0 %v359
      %777 = vmatprep.subr.bf16.mxu0 0
      %778 = vmatpush1.bf16.msra.mxu0 %v360
      %779 = vmatprep.subr.bf16.mxu0 0
      %780 = vmatpush1.bf16.msra.mxu0 0
      %781 = vmatprep.subr.bf16.mxu0 0
      %782 = vmatpush1.bf16.msra.mxu0 0
      %783 = vmatprep.subr.bf16.mxu0 0
      %784 = vmatpush1.bf16.msra.mxu0 0
      %785 = vmatprep.subr.bf16.mxu0 0
      %786 = vmatpush1.bf16.msra.mxu0 0
      %787 = vmatprep.subr.bf16.mxu0 0
      %788 = vmatpush1.bf16.msra.mxu0 0
      %789 = vmatprep.subr.bf16.mxu0 0
      %790 = vmatpush1.bf16.msra.mxu0 0
      %791 = vmatprep.subr.bf16.mxu0 0
      %792 = vmatpush1.bf16.msra.mxu0 0
      %793 = vmatprep.subr.bf16.mxu0 0
      %794 = vmatpush1.bf16.msra.mxu0 0
      %795 = vmatprep.subr.bf16.mxu0 0
      %796 = vmatpush1.bf16.msra.mxu0 0
      %797 = vmatprep.subr.bf16.mxu0 0
      %798 = vmatpush1.bf16.msra.mxu0 0
      %799 = vmatprep.subr.bf16.mxu0 0
      %800 = vmatpush1.bf16.msra.mxu0 0
      %801 = vmatprep.subr.bf16.mxu0 0
      %802 = vmatpush1.bf16.msra.mxu0 0
      %803 = vmatprep.subr.bf16.mxu0 0
      %804 = vmatpush1.bf16.msra.mxu0 0
      %805 = vmatprep.subr.bf16.mxu0 0
      %806 = vmatpush1.bf16.msra.mxu0 0
      %807 = vmatprep.mubr.bf16.mxu0 0
      %808 = vmatmul.mubr.bf16.gmra.mrb[0].mxu0 %v773
      %v809 = vpop.f32.mrb[0].mxu0
      %v810 = vadd.f32 0.0, %v809
      %v811 = vpop.f32.mrb[0].mxu0
      %v812 = vpop.f32.mrb[0].mxu0
      %v813 = vpop.f32.mrb[0].mxu0
      %814 = vdwg.mxu0
      %v815 = vadd.f32 %v770, %v810
      %v816 = vxor.u32 %v815, 2147483648
      %v817 = vmul.f32 %v816, 1.442695
      %v818 = vpow.pop %v817
      %v819 = vadd.f32 %v818, 1.0
      %v820 = vrcp.pop %v819
      %v821 = vmul.f32 1.0, %v820
      %v822 = vadd.f32 %v810, %v420
      %824 = vrot.lane.b32.xlu0 %v822, 64
      %v825 = vpop.permute.xlu0 %824
      %v827 = vmul.f32 %v821, %v825
      %829 = vrot.lane.b32.xlu0 %v827, 64
      %v830 = vpop.permute.xlu0 %829
      %v832 = vadd.f32 %v770, %v830
      %v833 = vtanh.pop %v832
      %v834 = vsub.f32 1.0, %v821
      %836 = vrot.lane.b32.xlu0 %v833, 96
      %v837 = vpop.permute.xlu0 %836
      %v839 = vmul.f32 %v834, %v837
      %841 = vrot.lane.b32.xlu0 %v667, 32
      %v842 = vpop.permute.xlu0 %841
      %v844 = vmul.f32 %v821, %v842
      %v845 = vadd.f32 %v839, %v844
      %v846 = vstv %s767
      %vm847 = vcmp.lt.s32.totalorder %v846, %v344
      %v848 = vsel %vm847, 1, 0
      %849 = vset.pattern.permute.xlu0 0
      %850 = vperm.xlu0 %849, %v848
      %v851 = vpop.permute.xlu0 %850
      %vm852 = vcmp.eq.s32.totalorder %v851, 1
      %854 = vrot.lane.b32.xlu0 %v845, 96
      %v855 = vpop.permute.xlu0 %854
      %v857 = vsel %vm852, %v855, %v667
      %v858 = vsel %vm852, %v855, 0.0
      %v859 = vpack.c.bf16 %v858, %v858
      %s860 = scalar_lea.vmem %s317, 4
      %861 = vst.msk [vmem:[%s860] sm:$0x3] %vm460, %v859
      %s862 = scalar_lea.vmem %s310, 2
      %v863 = vld [vmem:[%s862] sm:$0x3]
      %v864 = vunpack.c.l.bf16 %v863
      %v865 = vpack.c.bf16 %v762, %v762
      %v867 = vsel %vm363, %v865, 0
      %869 = vmatprep.subr.bf16.mxu0 0
      %870 = vmatpush1.bf16.msra.mxu0 %v474
      %871 = vmatprep.subr.bf16.mxu0 0
      %872 = vmatpush1.bf16.msra.mxu0 %v475
      %873 = vmatprep.subr.bf16.mxu0 0
      %874 = vmatpush1.bf16.msra.mxu0 0
      %875 = vmatprep.subr.bf16.mxu0 0
      %876 = vmatpush1.bf16.msra.mxu0 0
      %877 = vmatprep.subr.bf16.mxu0 0
      %878 = vmatpush1.bf16.msra.mxu0 0
      %879 = vmatprep.subr.bf16.mxu0 0
      %880 = vmatpush1.bf16.msra.mxu0 0
      %881 = vmatprep.subr.bf16.mxu0 0
      %882 = vmatpush1.bf16.msra.mxu0 0
      %883 = vmatprep.subr.bf16.mxu0 0
      %884 = vmatpush1.bf16.msra.mxu0 0
      %885 = vmatprep.subr.bf16.mxu0 0
      %886 = vmatpush1.bf16.msra.mxu0 0
      %887 = vmatprep.subr.bf16.mxu0 0
      %888 = vmatpush1.bf16.msra.mxu0 0
      %889 = vmatprep.subr.bf16.mxu0 0
      %890 = vmatpush1.bf16.msra.mxu0 0
      %891 = vmatprep.subr.bf16.mxu0 0
      %892 = vmatpush1.bf16.msra.mxu0 0
      %893 = vmatprep.subr.bf16.mxu0 0
      %894 = vmatpush1.bf16.msra.mxu0 0
      %895 = vmatprep.subr.bf16.mxu0 0
      %896 = vmatpush1.bf16.msra.mxu0 0
      %897 = vmatprep.subr.bf16.mxu0 0
      %898 = vmatpush1.bf16.msra.mxu0 0
      %899 = vmatprep.subr.bf16.mxu0 0
      %900 = vmatpush1.bf16.msra.mxu0 0
      %901 = vmatprep.mubr.bf16.mxu0 0
      %902 = vmatmul.mubr.bf16.gmra.mrb[0].mxu0 %v867
      %v903 = vpop.f32.mrb[0].mxu0
      %v904 = vadd.f32 0.0, %v903
      %v905 = vpop.f32.mrb[0].mxu0
      %v906 = vpop.f32.mrb[0].mxu0
      %v907 = vpop.f32.mrb[0].mxu0
      %908 = vdwg.mxu0
      %v909 = vadd.f32 %v864, %v904
      %v910 = vxor.u32 %v909, 2147483648
      %v911 = vmul.f32 %v910, 1.442695
      %v912 = vpow.pop %v911
      %v913 = vadd.f32 %v912, 1.0
      %v914 = vrcp.pop %v913
      %v915 = vmul.f32 1.0, %v914
      %v916 = vadd.f32 %v904, %v534
      %918 = vrot.lane.b32.xlu0 %v916, 64
      %v919 = vpop.permute.xlu0 %918
      %v921 = vmul.f32 %v915, %v919
      %923 = vrot.lane.b32.xlu0 %v921, 64
      %v924 = vpop.permute.xlu0 %923
      %v926 = vadd.f32 %v864, %v924
      %v927 = vtanh.pop %v926
      %v928 = vsub.f32 1.0, %v915
      %930 = vrot.lane.b32.xlu0 %v927, 96
      %v931 = vpop.permute.xlu0 %930
      %v933 = vmul.f32 %v928, %v931
      %935 = vrot.lane.b32.xlu0 %v762, 32
      %v936 = vpop.permute.xlu0 %935
      %v938 = vmul.f32 %v915, %v936
      %v939 = vadd.f32 %v933, %v938
      %s940 = ssub.s32 5, %s345
      %v941 = vstv %s940
      %vm942 = vcmp.lt.s32.totalorder %v941, %v344
      %v943 = vsel %vm942, 1, 0
      %944 = vset.pattern.permute.xlu0 0
      %945 = vperm.xlu0 %944, %v943
      %v946 = vpop.permute.xlu0 %945
      %vm947 = vcmp.eq.s32.totalorder %v946, 1
      %949 = vrot.lane.b32.xlu0 %v939, 96
      %v950 = vpop.permute.xlu0 %949
      %v952 = vsel %vm947, %v950, %v762
      %v953 = vsel %vm947, %v950, 0.0
      %v954 = vpack.c.bf16 %v953, %v953
      %s955 = scalar_lea.vmem %s324, 2
      %956 = vst.msk [vmem:[%s955] sm:$0x3] %vm460, %v954
      %s957 = sadd.s32 %s345, 3
      %s958 = scalar_lea.vmem %s303, 6
      %v959 = vld [vmem:[%s958] sm:$0x3]
      %v960 = vunpack.c.l.bf16 %v959
      %v961 = vpack.c.bf16 %v857, %v857
      %v963 = vsel %vm363, %v961, 0
      %965 = vmatprep.subr.bf16.mxu0 0
      %966 = vmatpush1.bf16.msra.mxu0 %v359
      %967 = vmatprep.subr.bf16.mxu0 0
      %968 = vmatpush1.bf16.msra.mxu0 %v360
      %969 = vmatprep.subr.bf16.mxu0 0
      %970 = vmatpush1.bf16.msra.mxu0 0
      %971 = vmatprep.subr.bf16.mxu0 0
      %972 = vmatpush1.bf16.msra.mxu0 0
      %973 = vmatprep.subr.bf16.mxu0 0
      %974 = vmatpush1.bf16.msra.mxu0 0
      %975 = vmatprep.subr.bf16.mxu0 0
      %976 = vmatpush1.bf16.msra.mxu0 0
      %977 = vmatprep.subr.bf16.mxu0 0
      %978 = vmatpush1.bf16.msra.mxu0 0
      %979 = vmatprep.subr.bf16.mxu0 0
      %980 = vmatpush1.bf16.msra.mxu0 0
      %981 = vmatprep.subr.bf16.mxu0 0
      %982 = vmatpush1.bf16.msra.mxu0 0
      %983 = vmatprep.subr.bf16.mxu0 0
      %984 = vmatpush1.bf16.msra.mxu0 0
      %985 = vmatprep.subr.bf16.mxu0 0
      %986 = vmatpush1.bf16.msra.mxu0 0
      %987 = vmatprep.subr.bf16.mxu0 0
      %988 = vmatpush1.bf16.msra.mxu0 0
      %989 = vmatprep.subr.bf16.mxu0 0
      %990 = vmatpush1.bf16.msra.mxu0 0
      %991 = vmatprep.subr.bf16.mxu0 0
      %992 = vmatpush1.bf16.msra.mxu0 0
      %993 = vmatprep.subr.bf16.mxu0 0
      %994 = vmatpush1.bf16.msra.mxu0 0
      %995 = vmatprep.subr.bf16.mxu0 0
      %996 = vmatpush1.bf16.msra.mxu0 0
      %997 = vmatprep.mubr.bf16.mxu0 0
      %998 = vmatmul.mubr.bf16.gmra.mrb[0].mxu0 %v963
      %v999 = vpop.f32.mrb[0].mxu0
      %v1000 = vadd.f32 0.0, %v999
      %v1001 = vpop.f32.mrb[0].mxu0
      %v1002 = vpop.f32.mrb[0].mxu0
      %v1003 = vpop.f32.mrb[0].mxu0
      %1004 = vdwg.mxu0
      %v1005 = vadd.f32 %v960, %v1000
      %v1006 = vxor.u32 %v1005, 2147483648
      %v1007 = vmul.f32 %v1006, 1.442695
      %v1008 = vpow.pop %v1007
      %v1009 = vadd.f32 %v1008, 1.0
      %v1010 = vrcp.pop %v1009
      %v1011 = vmul.f32 1.0, %v1010
      %v1012 = vadd.f32 %v1000, %v420
      %1014 = vrot.lane.b32.xlu0 %v1012, 64
      %v1015 = vpop.permute.xlu0 %1014
      %v1017 = vmul.f32 %v1011, %v1015
      %1019 = vrot.lane.b32.xlu0 %v1017, 64
      %v1020 = vpop.permute.xlu0 %1019
      %v1022 = vadd.f32 %v960, %v1020
      %v1023 = vtanh.pop %v1022
      %v1024 = vsub.f32 1.0, %v1011
      %1026 = vrot.lane.b32.xlu0 %v1023, 96
      %v1027 = vpop.permute.xlu0 %1026
      %v1029 = vmul.f32 %v1024, %v1027
      %1031 = vrot.lane.b32.xlu0 %v857, 32
      %v1032 = vpop.permute.xlu0 %1031
      %v1034 = vmul.f32 %v1011, %v1032
      %v1035 = vadd.f32 %v1029, %v1034
      %v1036 = vstv %s957
      %vm1037 = vcmp.lt.s32.totalorder %v1036, %v344
      %v1038 = vsel %vm1037, 1, 0
      %1039 = vset.pattern.permute.xlu0 0
      %1040 = vperm.xlu0 %1039, %v1038
      %v1041 = vpop.permute.xlu0 %1040
      %vm1042 = vcmp.eq.s32.totalorder %v1041, 1
      %1044 = vrot.lane.b32.xlu0 %v1035, 96
      %v1045 = vpop.permute.xlu0 %1044
      %v1047 = vsel %vm1042, %v1045, %v857
      %v1048 = vsel %vm1042, %v1045, 0.0
      %v1049 = vpack.c.bf16 %v1048, %v1048
      %s1050 = scalar_lea.vmem %s317, 6
      %1051 = vst.msk [vmem:[%s1050] sm:$0x3] %vm460, %v1049
      %v1052 = vld [vmem:[%s310] sm:$0x3]
      %v1053 = vunpack.c.l.bf16 %v1052
      %v1054 = vpack.c.bf16 %v952, %v952
      %v1056 = vsel %vm363, %v1054, 0
      %1058 = vmatprep.subr.bf16.mxu0 0
      %1059 = vmatpush1.bf16.msra.mxu0 %v474
      %1060 = vmatprep.subr.bf16.mxu0 0
      %1061 = vmatpush1.bf16.msra.mxu0 %v475
      %1062 = vmatprep.subr.bf16.mxu0 0
      %1063 = vmatpush1.bf16.msra.mxu0 0
      %1064 = vmatprep.subr.bf16.mxu0 0
      %1065 = vmatpush1.bf16.msra.mxu0 0
      %1066 = vmatprep.subr.bf16.mxu0 0
      %1067 = vmatpush1.bf16.msra.mxu0 0
      %1068 = vmatprep.subr.bf16.mxu0 0
      %1069 = vmatpush1.bf16.msra.mxu0 0
      %1070 = vmatprep.subr.bf16.mxu0 0
      %1071 = vmatpush1.bf16.msra.mxu0 0
      %1072 = vmatprep.subr.bf16.mxu0 0
      %1073 = vmatpush1.bf16.msra.mxu0 0
      %1074 = vmatprep.subr.bf16.mxu0 0
      %1075 = vmatpush1.bf16.msra.mxu0 0
      %1076 = vmatprep.subr.bf16.mxu0 0
      %1077 = vmatpush1.bf16.msra.mxu0 0
      %1078 = vmatprep.subr.bf16.mxu0 0
      %1079 = vmatpush1.bf16.msra.mxu0 0
      %1080 = vmatprep.subr.bf16.mxu0 0
      %1081 = vmatpush1.bf16.msra.mxu0 0
      %1082 = vmatprep.subr.bf16.mxu0 0
      %1083 = vmatpush1.bf16.msra.mxu0 0
      %1084 = vmatprep.subr.bf16.mxu0 0
      %1085 = vmatpush1.bf16.msra.mxu0 0
      %1086 = vmatprep.subr.bf16.mxu0 0
      %1087 = vmatpush1.bf16.msra.mxu0 0
      %1088 = vmatprep.subr.bf16.mxu0 0
      %1089 = vmatpush1.bf16.msra.mxu0 0
      %1090 = vmatprep.mubr.bf16.mxu0 0
      %1091 = vmatmul.mubr.bf16.gmra.mrb[0].mxu0 %v1056
      %v1092 = vpop.f32.mrb[0].mxu0
      %v1093 = vadd.f32 0.0, %v1092
      %v1094 = vpop.f32.mrb[0].mxu0
      %v1095 = vpop.f32.mrb[0].mxu0
      %v1096 = vpop.f32.mrb[0].mxu0
      %1097 = vdwg.mxu0
      %v1098 = vadd.f32 %v1053, %v1093
      %v1099 = vxor.u32 %v1098, 2147483648
      %v1100 = vmul.f32 %v1099, 1.442695
      %v1101 = vpow.pop %v1100
      %v1102 = vadd.f32 %v1101, 1.0
      %v1103 = vrcp.pop %v1102
      %v1104 = vmul.f32 1.0, %v1103
      %v1105 = vadd.f32 %v1093, %v534
      %1107 = vrot.lane.b32.xlu0 %v1105, 64
      %v1108 = vpop.permute.xlu0 %1107
      %v1110 = vmul.f32 %v1104, %v1108
      %1112 = vrot.lane.b32.xlu0 %v1110, 64
      %v1113 = vpop.permute.xlu0 %1112
      %v1115 = vadd.f32 %v1053, %v1113
      %v1116 = vtanh.pop %v1115
      %v1117 = vsub.f32 1.0, %v1104
      %1119 = vrot.lane.b32.xlu0 %v1116, 96
      %v1120 = vpop.permute.xlu0 %1119
      %v1122 = vmul.f32 %v1117, %v1120
      %1124 = vrot.lane.b32.xlu0 %v952, 32
      %v1125 = vpop.permute.xlu0 %1124
      %v1127 = vmul.f32 %v1104, %v1125
      %v1128 = vadd.f32 %v1122, %v1127
      %s1129 = ssub.s32 4, %s345
      %v1130 = vstv %s1129
      %vm1131 = vcmp.lt.s32.totalorder %v1130, %v344
      %v1132 = vsel %vm1131, 1, 0
      %1133 = vset.pattern.permute.xlu0 0
      %1134 = vperm.xlu0 %1133, %v1132
      %v1135 = vpop.permute.xlu0 %1134
      %vm1136 = vcmp.eq.s32.totalorder %v1135, 1
      %1138 = vrot.lane.b32.xlu0 %v1128, 96
      %v1139 = vpop.permute.xlu0 %1138
      %v1141 = vsel %vm1136, %v1139, %v952
      %v1142 = vsel %vm1136, %v1139, 0.0
      %v1143 = vpack.c.bf16 %v1142, %v1142
      %1144 = vst.msk [vmem:[%s324] sm:$0x3] %vm460, %v1143
      %vm1145 = vcmask 257024
      %1146 = vst.msk [vmem:[#allocation2] sm:$0xf] %vm1145, %v1047
      %1147 = vst.msk [vmem:[#allocation3] sm:$0xf] %vm1145, %v1141
      %1148 = vst.msk [vmem:[%s7] sm:$0xf] %vm1145, %v1047
      %s1149 = scalar_lea.vmem %s7, 4
      %1150 = vst.msk [vmem:[%s1149] sm:$0xf] %vm1145, %v1141
      %s1151 = smul.u32 4, %s19
      %p1152 = scmp.lt.s32.totalorder %s1151, 7
      %s1153 = scalar_select %p1152, %s1151, 7
      %s1154 = smul.addr %s1153, 2
      %s1155 = scalar_lea.vmem %s5, %s1154
      %s1156 = ssub.s32 1, %s19
      %s1157 = smul.u32 4, %s1156
      %p1158 = scmp.lt.s32.totalorder %s1157, 7
      %s1159 = scalar_select %p1158, %s1157, 7
      %s1160 = smul.addr %s1159, 2
      %s1161 = scalar_lea.vmem %s6, %s1160
      // Predicated region
      $region45: #{gru_encoder_forward.2} parent=39 // pred_check
        %p1162 = pneg %p154
      $region46: #{gru_encoder_forward.2} parent=39 // pred_check_branch
        %1164 = sbr.rel (%p1162) target = $region48
      $region47: #{gru_encoder_forward.2} parent=39 // pred_region
        %s1165 = smul.u32 4, %s19
      $region48: #{gru_encoder_forward.2} parent=39 // pred_fallthru
        _
      // Predicated region
      $region49: #{gru_encoder_forward.2} parent=39 // pred_check
        %p1166 = pneg %p182
      $region50: #{gru_encoder_forward.2} parent=39 // pred_check_branch
        %1168 = sbr.rel (%p1166) target = $region52
      $region51: #{gru_encoder_forward.2} parent=39 // pred_region
        %s1169 = ssub.s32 1, %s19
        %s1170 = smul.u32 4, %s1169
      $region52: #{gru_encoder_forward.2} parent=39 // pred_fallthru
        _
      // Predicated region
      $region53: #{gru_encoder_forward.2} parent=39 // pred_check
        %p1171 = pneg %p203
      $region54: #{gru_encoder_forward.2} parent=39 // pred_check_branch
        %1173 = sbr.rel (%p1171) target = $region56
      $region55: #{gru_encoder_forward.2} parent=39 // pred_region
        _
      $region56: #{gru_encoder_forward.2} parent=39 // pred_fallthru
        _
      // Predicated region
      $region57: #{gru_encoder_forward.2} parent=39 // pred_check
        %p1174 = pneg %p203
      $region58: #{gru_encoder_forward.2} parent=39 // pred_check_branch
        %1176 = sbr.rel (%p1174) target = $region60
      $region59: #{gru_encoder_forward.2} parent=39 // pred_region
        _
      $region60: #{gru_encoder_forward.2} parent=39 // pred_fallthru
        _
    $region40: #{gru_encoder_forward.2} parent=5 // pred_fallthru
      _
    %p1177 = scmp.le.s32.totalorder 2, %s14
    // Predicated region
    $region61: #{gru_encoder_forward.2} parent=5 // pred_check
      %p1178 = pneg %p1177
    $region62: #{gru_encoder_forward.2} parent=5 // pred_check_branch
      %1180 = sbr.rel (%p1178) target = $region64
    $region63: #{gru_encoder_forward.2} parent=5 // pred_region
      %s1181 = ssub.s32 %s14, 2
      // Predicated region
      $region65: #{gru_encoder_forward.2} parent=63 // pred_check
        %p1182 = pneg %p160
      $region66: #{gru_encoder_forward.2} parent=63 // pred_check_branch
        %1184 = sbr.rel (%p1182) target = $region68
      $region67: #{gru_encoder_forward.2} parent=63 // pred_region
        %s1185 = smul.u32 4, %s20
        %p1186 = scmp.lt.s32.totalorder %s1185, 7
        %s1187 = scalar_select %p1186, %s1185, 7
        %s1188 = smul.addr %s1187, 2
        %s1189 = scalar_lea.vmem %s5, %s1188
      $region68: #{gru_encoder_forward.2} parent=63 // pred_fallthru
        _
      // Predicated region
      $region69: #{gru_encoder_forward.2} parent=63 // pred_check
        %p1190 = pneg %p188
      $region70: #{gru_encoder_forward.2} parent=63 // pred_check_branch
        %1192 = sbr.rel (%p1190) target = $region72
      $region71: #{gru_encoder_forward.2} parent=63 // pred_region
        %s1193 = ssub.s32 1, %s20
        %s1194 = smul.u32 4, %s1193
        %p1195 = scmp.lt.s32.totalorder %s1194, 7
        %s1196 = scalar_select %p1195, %s1194, 7
        %s1197 = smul.addr %s1196, 2
        %s1198 = scalar_lea.vmem %s6, %s1197
      $region72: #{gru_encoder_forward.2} parent=63 // pred_fallthru
        _
    $region64: #{gru_encoder_forward.2} parent=5 // pred_fallthru
      _
  $region6: #{gru_encoder_forward.2} parent=0 // loop_footer
    %s18 = sadd.s32 1, %s14
  $region7: #{gru_encoder_forward.2} parent=0 // loop_footer_branch
    %13 = sbr.rel target = $region3
  $region8: #{gru_encoder_forward.2} parent=0 // loop_exit
    _

</llo_original>
